<compile_context>
chip_gen: v5e
topology: v5e:2x2
jax: 0.10.0
libtpu: 0.0.40
codegen_flags: <defaults>
</compile_context>

<pallas_src>
import functools

import jax
import jax.numpy as jnp
from jax import lax
from jax.experimental import pallas as pl
from jax.experimental.pallas import tpu as pltpu


# --------------------------------------------------------------------------
# Kernel
# --------------------------------------------------------------------------
def _resblock_kernel(x_ref, xh_ref, w1_ref, b1_ref, w2_ref, b2_ref, o_ref, *,
                     T, W, C, Ch, slope, dy_fused):
    """One (image, row-block) per grid step.

    x_ref : (1, T, W, C)        central rows (input dtype; also the residual)
    xh_ref: (1, 1, 2*W, C)      halo rows: [0:W] = row above, [W:] = row below
    w1_ref: (C, Ch)             folded 1x1 conv weight (compute dtype)
    b1_ref: (1, Ch)             folded conv1 bias (f32)
    w2_ref: (9*Ch, C) if dy_fused else (3, 3*Ch, C)   folded 3x3 conv weight
    b2_ref: (1, C)              folded conv2 bias (f32)
    o_ref : (1, T, W, C)        output
    """
    f32 = jnp.float32
    cdt = w1_ref.dtype                      # matmul operand dtype (bf16/f32)
    r = pl.program_id(1)
    n_rows = pl.num_programs(1)

    # ---- conv1 (1x1) on the T central rows: one MXU matmul ----------------
    # NOTE: the (T, W) -> (T*W) merges are free when W % 8 == 0; for Darknet
    # maps with W in {52, 26, 13} pad W to a multiple of 8 at the network
    # level to avoid per-step sublane relayouts.
    x_c = x_ref[0]                          # (T, W, C)
    xf = x_c.reshape(T * W, C)
    h1 = jnp.dot(xf.astype(cdt), w1_ref[...], preferred_element_type=f32)
    h1 = h1 + b1_ref[...]
    h1 = jnp.where(h1 > 0, h1, slope * h1)              # LeakyReLU(0.1), f32
    h1_c = h1.astype(cdt).reshape(T, W, Ch)

    # ---- conv1 on the two halo rows (row above / below this block) --------
    xh = xh_ref[0, 0]                       # (2*W, C)
    hh = jnp.dot(xh.astype(cdt), w1_ref[...], preferred_element_type=f32)
    hh = hh + b1_ref[...]
    hh = jnp.where(hh > 0, hh, slope * hh)               # (2W, Ch) f32
    # conv2 zero-pads h1 (not x) at the image boundary -> zero the halo h1
    # rows that fall outside the image.
    top_valid = (r > 0).astype(f32)
    bot_valid = (r < n_rows - 1).astype(f32)
    h_top = (hh[:W] * top_valid).astype(cdt).reshape(1, W, Ch)
    h_bot = (hh[W:] * bot_valid).astype(cdt).reshape(1, W, Ch)

    # ---- conv2 (3x3, padding=1) as im2col matmul(s) ------------------------
    slab = jnp.concatenate([h_top, h1_c, h_bot], axis=0)        # (T+2, W, Ch)
    # dx = -1 / +1 neighbours: 1-column shift with an explicit zero column.
    zcol = jnp.zeros((T + 2, 1, Ch), cdt)
    h_m1 = jnp.concatenate([zcol, slab[:, :W - 1, :]], axis=1)  # col w-1
    h_p1 = jnp.concatenate([slab[:, 1:, :], zcol], axis=1)      # col w+1

    if dy_fused:
        # Full 9-tap im2col, one wide-K MXU matmul (K = 9*Ch): best MXU fill
        # for small Ch on the 256-deep v6e / v7x MXUs.
        parts = []
        for dy in range(3):
            parts.extend([h_m1[dy:dy + T], slab[dy:dy + T], h_p1[dy:dy + T]])
        p9 = jnp.concatenate(parts, axis=-1)                    # (T, W, 9Ch)
        acc = jnp.dot(p9.reshape(T * W, 9 * Ch), w2_ref[...],
                      preferred_element_type=f32)
    else:
        # Three wide-K matmuls (K = 3*Ch) over row windows of one im2col slab
        # -- no extra zero-padded copy of the 3Ch-wide tensor.
        p3 = jnp.concatenate([h_m1, slab, h_p1], axis=-1)       # (T+2, W, 3Ch)
        K = 3 * Ch
        acc = jnp.dot(p3[0:T].reshape(T * W, K), w2_ref[0],
                      preferred_element_type=f32)
        acc = acc + jnp.dot(p3[1:T + 1].reshape(T * W, K), w2_ref[1],
                            preferred_element_type=f32)
        acc = acc + jnp.dot(p3[2:T + 2].reshape(T * W, K), w2_ref[2],
                            preferred_element_type=f32)

    acc = acc + b2_ref[...]
    acc = jnp.where(acc > 0, acc, slope * acc)                  # LeakyReLU

    # ---- residual add at the input precision, store ------------------------
    out = acc + xf.astype(f32)
    o_ref[0] = out.reshape(T, W, C).astype(o_ref.dtype)


# --------------------------------------------------------------------------
# VMEM budgeting / tiling heuristics
# --------------------------------------------------------------------------
def _vmem_budget_bytes():
    """3/4 of the chip's VMEM capacity (conservative v7x default on failure)."""
    cap = 64 * 1024 * 1024
    try:
        info = pltpu.get_tpu_info()
        cap = int(getattr(info, "vmem_capacity_bytes", cap) or cap)
    except Exception:
        pass
    return (cap * 3) // 4


def _estimate_vmem_bytes(T, W, C, Ch, x_bytes, c_bytes, dy_fused):
    rows = T + 2
    # Double-buffered pipelined blocks: x tile + halo tile + output tile.
    blocks = 2 * (T * W * C + 2 * W * C + T * W * C) * x_bytes
    # Weights + biases (x2 in case single-buffering is unavailable).
    weights = 2 * ((C * Ch + 9 * Ch * C) * c_bytes + (Ch + C) * 4)
    # In-kernel temporaries: slab + two dx-shifted copies + im2col + f32 pieces.
    k = 9 * Ch if dy_fused else 3 * Ch
    tmp = 3 * rows * W * Ch * c_bytes
    tmp += (T if dy_fused else rows) * W * k * c_bytes
    tmp += T * W * (Ch + 2 * C) * 4
    return blocks + weights + tmp


def _auto_block_rows(H, W, C, Ch, x_bytes, c_bytes, dy_fused, budget):
    divisors = [d for d in range(H, 0, -1) if H % d == 0]
    for d in divisors:
        est = _estimate_vmem_bytes(d, W, C, Ch, x_bytes, c_bytes, dy_fused)
        if est * 5 // 4 <= budget:          # 25% slack
            return d
    return divisors[-1]


# --------------------------------------------------------------------------
# Wrappers
# --------------------------------------------------------------------------
def resblock_pallas_nhwc(x_nhwc, w1, b1, w2, b2, *, slope=0.1,
                         compute_dtype=jnp.bfloat16, block_rows=None,
                         dy_fused=None, single_buffer_weights=True):
    """ResBlock forward on NHWC activations (preferred entry point).

    x_nhwc: (N, H, W, C)      input activations (residual keeps this dtype).
    w1:     (C, Ch)           1x1 conv weight with BN1 folded in.
    b1:     (Ch,)             folded BN1 bias.
    w2:     (3, 3, Ch, C)     3x3 conv weight (HWIO) with BN2 folded in.
    b2:     (C,)              folded BN2 bias.
    compute_dtype: matmul-operand dtype (default bf16: 2x MXU throughput and
        half the DMA/VMEM bytes on v5e/v6e/v7x).  Accumulation, bias,
        LeakyReLU and the residual add always run in f32.  Pass jnp.float32
        (or None -> x dtype) for the bit-faithful path.
    block_rows: rows per grid step (must divide H); None -> largest divisor
        of H whose estimated VMEM footprint fits the chip budget.
    dy_fused: True -> single K=9*Ch im2col matmul; False -> three K=3*Ch
        matmuls; None -> auto (True iff Ch <= 64).
    """
    N, H, W, C = x_nhwc.shape
    Ch = w1.shape[1]
    assert C == 2 * Ch, "in_channels must be even (C == 2*Ch)"
    out_dtype = x_nhwc.dtype
    cdt = (jnp.dtype(compute_dtype) if compute_dtype is not None
           else jnp.dtype(out_dtype))

    if dy_fused is None:
        dy_fused = Ch <= 64

    budget = _vmem_budget_bytes()
    x_bytes = jnp.dtype(out_dtype).itemsize
    if block_rows is None:
        block_rows = _auto_block_rows(H, W, C, Ch, x_bytes, cdt.itemsize,
                                      dy_fused, budget)
    assert H % block_rows == 0, "block_rows must divide H"
    T = int(block_rows)
    nR = H // T

    # Halo side input: x rows r*T-1 (top) and r*T+T (bottom) per row block,
    # ~2/T of x.  Out-of-image rows are zero here and their conv1 output is
    # zeroed in-kernel (conv2 zero-pads h1, not x).
    zero_row = jnp.zeros((N, 1, W, C), out_dtype)
    top = jnp.concatenate([zero_row, x_nhwc[:, T - 1:(nR - 1) * T:T]], axis=1)
    bot = jnp.concatenate([x_nhwc[:, T:H:T], zero_row], axis=1)
    x_halo = jnp.stack([top, bot], axis=2).reshape(N, nR, 2 * W, C)

    w1c = w1.astype(cdt)
    if dy_fused:
        w2c = w2.reshape(9 * Ch, C).astype(cdt)       # (ky, kx, ci) fused K
    else:
        w2c = w2.reshape(3, 3 * Ch, C).astype(cdt)    # ky-major, (kx, ci) K
    b1r = jnp.reshape(b1, (1, Ch)).astype(jnp.float32)
    b2r = jnp.reshape(b2, (1, C)).astype(jnp.float32)

    kernel = functools.partial(_resblock_kernel, T=T, W=W, C=C, Ch=Ch,
                               slope=float(slope), dy_fused=bool(dy_fused))

    def _call(single_buf):
        # Weights/biases: constant index_map (no re-DMA across steps); with
        # pl.Buffered(1) they are also only buffered once in VMEM.
        wkw = dict(pipeline_mode=pl.Buffered(1)) if single_buf else {}
        if dy_fused:
            w2_spec = pl.BlockSpec((9 * Ch, C), lambda n, r: (0, 0), **wkw)
        else:
            w2_spec = pl.BlockSpec((3, 3 * Ch, C), lambda n, r: (0, 0, 0),
                                   **wkw)
        grid_spec = pltpu.PrefetchScalarGridSpec(
            num_scalar_prefetch=0,
            grid=(N, nR),
            in_specs=[
                pl.BlockSpec((1, T, W, C), lambda n, r: (n, r, 0, 0)),
                pl.BlockSpec((1, 1, 2 * W, C), lambda n, r: (n, r, 0, 0)),
                pl.BlockSpec((C, Ch), lambda n, r: (0, 0), **wkw),
                pl.BlockSpec((1, Ch), lambda n, r: (0, 0), **wkw),
                w2_spec,
                pl.BlockSpec((1, C), lambda n, r: (0, 0), **wkw),
            ],
            out_specs=pl.BlockSpec((1, T, W, C), lambda n, r: (n, r, 0, 0)),
        )
        return pl.pallas_call(
            kernel,
            out_shape=jax.ShapeDtypeStruct((N, H, W, C), out_dtype),
            grid_spec=grid_spec,
            compiler_params=pltpu.CompilerParams(
                dimension_semantics=("parallel", "parallel"),
                vmem_limit_bytes=int(budget),
            ),
        )(x_nhwc, x_halo, w1c, b1r, w2c, b2r)

    if single_buffer_weights:
        try:
            return _call(True)
        except Exception:
            # pipeline_mode=pl.Buffered(1) not supported by this JAX/Mosaic
            # build -> fall back to default double-buffered weight specs.
            pass
    return _call(False)


def resblock_pallas(x_nchw, w1, b1, w2, b2, **kwargs):
    """PyTorch-layout (NCHW) convenience wrapper.

    NOTE: in a full network keep activations NHWC and call
    resblock_pallas_nhwc directly -- these two transposes are extra full HBM
    round-trips of the tensor (worst on v5e's lower HBM bandwidth).
    """
    x = jnp.transpose(x_nchw, (0, 2, 3, 1))
    y = resblock_pallas_nhwc(x, w1, b1, w2, b2, **kwargs)
    return jnp.transpose(y, (0, 3, 1, 2))


def fold_bn(w_hwio, gamma, beta, mean, var, eps=1e-5):
    """Fold eval-mode BatchNorm into conv weights (HWIO) + bias."""
    scale = gamma / jnp.sqrt(var + eps)             # (Cout,)
    w_f = w_hwio * scale                            # broadcast over last axis
    b_f = beta - mean * scale
    return w_f, b_f


def resblock_reference(x_nchw, w1_hwio, bn1, w2_hwio, bn2, slope=0.1):
    """Pure-JAX reference (NHWC convs, eval-mode BN, full-precision convs)."""
    def bn(y, p):
        g, b, m, v = p
        return (y - m) / jnp.sqrt(v + 1e-5) * g + b

    def lrelu(y):
        return jnp.where(y > 0, y, slope * y)

    x = jnp.transpose(x_nchw, (0, 2, 3, 1))
    dn = lax.conv_dimension_numbers(x.shape, w1_hwio.shape,
                                    ("NHWC", "HWIO", "NHWC"))
    h = lax.conv_general_dilated(x, w1_hwio, (1, 1), "VALID",
                                 dimension_numbers=dn,
                                 precision=lax.Precision.HIGHEST)
    h = lrelu(bn(h, bn1))
    dn2 = lax.conv_dimension_numbers(h.shape, w2_hwio.shape,
                                     ("NHWC", "HWIO", "NHWC"))
    o = lax.conv_general_dilated(h, w2_hwio, (1, 1), "SAME",
                                 dimension_numbers=dn2,
                                 precision=lax.Precision.HIGHEST)
    o = lrelu(bn(o, bn2))
    return jnp.transpose(o + x, (0, 3, 1, 2))


if __name__ == "__main__":
    N, C, H, W = 2, 4, 16, 16
    Ch = C // 2

    key = jax.random.PRNGKey(0)
    kx, kw1, kw2 = jax.random.split(key, 3)

    x = jax.random.normal(kx, (N, C, H, W), dtype=jnp.float32)

    # Conv weights (no conv bias: ConvModule with BN uses bias=False).
    w1_hwio = jax.random.normal(kw1, (1, 1, C, Ch), dtype=jnp.float32) * 0.3
    w2_hwio = jax.random.normal(kw2, (3, 3, Ch, C), dtype=jnp.float32) * 0.1

    # Deterministic eval-mode BN params (gamma, beta, running_mean, running_var).
    bn1 = (jnp.linspace(0.8, 1.2, Ch), jnp.linspace(-0.1, 0.1, Ch),
           jnp.linspace(-0.2, 0.2, Ch), jnp.linspace(0.5, 1.5, Ch))
    bn2 = (jnp.linspace(0.9, 1.1, C), jnp.linspace(-0.05, 0.05, C),
           jnp.linspace(-0.1, 0.1, C), jnp.linspace(0.7, 1.3, C))

    # Fold BN into conv weights + bias for the kernel.
    w1_f, b1_f = fold_bn(w1_hwio, *bn1)             # (1,1,C,Ch), (Ch,)
    w2_f, b2_f = fold_bn(w2_hwio, *bn2)             # (3,3,Ch,C), (C,)
    w1_mat = w1_f.reshape(C, Ch)

    ref = resblock_reference(x, w1_hwio, bn1, w2_hwio, bn2)

    # 1) f32 matmul operands, explicit row tiling (exercises the halo path),
    #    fused K=9*Ch im2col.
    out = resblock_pallas(x, w1_mat, b1_f, w2_f, b2_f,
                          compute_dtype=jnp.float32, block_rows=4,
                          dy_fused=True)
    out = jax.block_until_ready(out)
    assert out.shape == (N, C, H, W)
    assert jnp.allclose(out, ref, atol=1e-2, rtol=1e-2), (
        float(jnp.max(jnp.abs(out - ref))))

    # 2) f32, three K=3*Ch matmuls (non-fused dy path), different tiling.
    out2 = resblock_pallas(x, w1_mat, b1_f, w2_f, b2_f,
                           compute_dtype=jnp.float32, block_rows=8,
                           dy_fused=False)
    out2 = jax.block_until_ready(out2)
    assert jnp.allclose(out2, ref, atol=1e-2, rtol=1e-2), (
        float(jnp.max(jnp.abs(out2 - ref))))

    # 3) Default config: bf16 matmul operands (f32 accumulation + f32 skip),
    #    auto row-block size.
    out3 = resblock_pallas(x, w1_mat, b1_f, w2_f, b2_f)
    out3 = jax.block_until_ready(out3)
    assert jnp.allclose(out3, ref, atol=5e-2, rtol=5e-2), (
        float(jnp.max(jnp.abs(out3 - ref))))

    print("KERNEL_OK")
</pallas_src>

<mosaic_0001>
module attributes {stable_mosaic.version = 11 : i64} {
  func.func @_resblock_kernel(%arg0: i32, %arg1: i32, %arg2: memref<1x4x16x4xf32, #tpu.memory_space<vmem>>, %arg3: memref<1x1x32x4xf32, #tpu.memory_space<vmem>>, %arg4: memref<4x2xf32, #tpu.memory_space<vmem>>, %arg5: memref<1x2xf32, #tpu.memory_space<vmem>>, %arg6: memref<18x4xf32, #tpu.memory_space<vmem>>, %arg7: memref<1x4xf32, #tpu.memory_space<vmem>>, %arg8: memref<1x4x16x4xf32, #tpu.memory_space<vmem>>) attributes {dimension_semantics = [#tpu.dimension_semantics<parallel>, #tpu.dimension_semantics<parallel>], iteration_bounds = array<i64: 2, 4>, scalar_prefetch = 0 : i64, scratch_operands = 0 : i64, tpu.core_type = #tpu.core_type<tc>, window_params = [{transform_indices = @transform_0, window_bounds = array<i64: 1, 4, 16, 4>}, {transform_indices = @transform_1, window_bounds = array<i64: 1, 1, 32, 4>}, {pipeline_mode = #tpu.pipeline_mode<synchronous>, transform_indices = @transform_2, window_bounds = array<i64: 4, 2>}, {pipeline_mode = #tpu.pipeline_mode<synchronous>, transform_indices = @transform_3, window_bounds = array<i64: 1, 2>}, {pipeline_mode = #tpu.pipeline_mode<synchronous>, transform_indices = @transform_4, window_bounds = array<i64: 18, 4>}, {pipeline_mode = #tpu.pipeline_mode<synchronous>, transform_indices = @transform_5, window_bounds = array<i64: 1, 4>}, {transform_indices = @transform_6, window_bounds = array<i64: 1, 4, 16, 4>}]} {
    %c0 = arith.constant 0 : index
    %c0_0 = arith.constant 0 : index
    %c0_1 = arith.constant 0 : index
    %c0_2 = arith.constant 0 : index
    %0 = vector.load %arg2[%c0, %c0_0, %c0_1, %c0_2] : memref<1x4x16x4xf32, #tpu.memory_space<vmem>>, vector<1x4x16x4xf32>
    %1 = vector.shape_cast %0 : vector<1x4x16x4xf32> to vector<4x16x4xf32>
    %2 = vector.shape_cast %1 : vector<4x16x4xf32> to vector<64x4xf32>
    %c0_3 = arith.constant 0 : index
    %c0_4 = arith.constant 0 : index
    %3 = vector.load %arg4[%c0_3, %c0_4] : memref<4x2xf32, #tpu.memory_space<vmem>>, vector<4x2xf32>
    %cst = arith.constant dense<0.000000e+00> : vector<64x2xf32>
    %4 = tpu.matmul %2, %3, %cst {dimension_numbers = #tpu.dot_dimension_numbers<[1], [0], [0], [1], [0, 0, 1, 1], [], []>} : vector<64x4xf32>, vector<4x2xf32>, vector<64x2xf32> -> vector<64x2xf32>
    %c0_5 = arith.constant 0 : index
    %c0_6 = arith.constant 0 : index
    %5 = vector.load %arg5[%c0_5, %c0_6] : memref<1x2xf32, #tpu.memory_space<vmem>>, vector<1x2xf32>
    %6 = vector.broadcast %5 : vector<1x2xf32> to vector<64x2xf32>
    %7 = arith.addf %4, %6 : vector<64x2xf32>
    %cst_7 = arith.constant 0.000000e+00 : f32
    %8 = vector.broadcast %cst_7 : f32 to vector<64x2xf32>
    %9 = arith.cmpf ogt, %7, %8 : vector<64x2xf32>
    %cst_8 = arith.constant 1.000000e-01 : f32
    %10 = vector.broadcast %cst_8 : f32 to vector<64x2xf32>
    %11 = arith.mulf %10, %7 : vector<64x2xf32>
    %12 = arith.select %9, %7, %11 : vector<64x2xi1>, vector<64x2xf32>
    %13 = vector.shape_cast %12 : vector<64x2xf32> to vector<4x16x2xf32>
    %c0_9 = arith.constant 0 : index
    %c0_10 = arith.constant 0 : index
    %c0_11 = arith.constant 0 : index
    %c0_12 = arith.constant 0 : index
    %14 = vector.load %arg3[%c0_9, %c0_10, %c0_11, %c0_12] : memref<1x1x32x4xf32, #tpu.memory_space<vmem>>, vector<1x1x32x4xf32>
    %15 = vector.shape_cast %14 : vector<1x1x32x4xf32> to vector<32x4xf32>
    %c0_13 = arith.constant 0 : index
    %c0_14 = arith.constant 0 : index
    %16 = vector.load %arg4[%c0_13, %c0_14] : memref<4x2xf32, #tpu.memory_space<vmem>>, vector<4x2xf32>
    %cst_15 = arith.constant dense<0.000000e+00> : vector<32x2xf32>
    %17 = tpu.matmul %15, %16, %cst_15 {dimension_numbers = #tpu.dot_dimension_numbers<[1], [0], [0], [1], [0, 0, 1, 1], [], []>} : vector<32x4xf32>, vector<4x2xf32>, vector<32x2xf32> -> vector<32x2xf32>
    %c0_16 = arith.constant 0 : index
    %c0_17 = arith.constant 0 : index
    %18 = vector.load %arg5[%c0_16, %c0_17] : memref<1x2xf32, #tpu.memory_space<vmem>>, vector<1x2xf32>
    %19 = vector.broadcast %18 : vector<1x2xf32> to vector<32x2xf32>
    %20 = arith.addf %17, %19 : vector<32x2xf32>
    %cst_18 = arith.constant 0.000000e+00 : f32
    %21 = vector.broadcast %cst_18 : f32 to vector<32x2xf32>
    %22 = arith.cmpf ogt, %20, %21 : vector<32x2xf32>
    %cst_19 = arith.constant 1.000000e-01 : f32
    %23 = vector.broadcast %cst_19 : f32 to vector<32x2xf32>
    %24 = arith.mulf %23, %20 : vector<32x2xf32>
    %25 = arith.select %22, %20, %24 : vector<32x2xi1>, vector<32x2xf32>
    %c0_i32 = arith.constant 0 : i32
    %26 = arith.cmpi sgt, %arg1, %c0_i32 : i32
    %27 = arith.extui %26 : i1 to i32
    %28 = arith.sitofp %27 : i32 to f32
    %c3_i32 = arith.constant 3 : i32
    %29 = arith.cmpi slt, %arg1, %c3_i32 : i32
    %30 = arith.extui %29 : i1 to i32
    %31 = arith.sitofp %30 : i32 to f32
    %32 = vector.extract_strided_slice %25 {offsets = [0, 0], sizes = [16, 2], strides = [1, 1]} : vector<32x2xf32> to vector<16x2xf32>
    %33 = vector.broadcast %28 : f32 to vector<16x2xf32>
    %34 = arith.mulf %32, %33 : vector<16x2xf32>
    %35 = vector.shape_cast %34 : vector<16x2xf32> to vector<1x16x2xf32>
    %36 = vector.extract_strided_slice %25 {offsets = [16, 0], sizes = [16, 2], strides = [1, 1]} : vector<32x2xf32> to vector<16x2xf32>
    %37 = vector.broadcast %31 : f32 to vector<16x2xf32>
    %38 = arith.mulf %36, %37 : vector<16x2xf32>
    %39 = vector.shape_cast %38 : vector<16x2xf32> to vector<1x16x2xf32>
    %40 = tpu.concatenate %35, %13, %39 in 0 : vector<1x16x2xf32>, vector<4x16x2xf32>, vector<1x16x2xf32> -> vector<6x16x2xf32>
    %cst_20 = arith.constant 0.000000e+00 : f32
    %41 = vector.broadcast %cst_20 : f32 to vector<6x1x2xf32>
    %42 = vector.extract_strided_slice %40 {offsets = [0, 0, 0], sizes = [6, 15, 2], strides = [1, 1, 1]} : vector<6x16x2xf32> to vector<6x15x2xf32>
    %43 = tpu.concatenate %41, %42 in 1 : vector<6x1x2xf32>, vector<6x15x2xf32> -> vector<6x16x2xf32>
    %44 = vector.extract_strided_slice %40 {offsets = [0, 1, 0], sizes = [6, 15, 2], strides = [1, 1, 1]} : vector<6x16x2xf32> to vector<6x15x2xf32>
    %45 = tpu.concatenate %44, %41 in 1 : vector<6x15x2xf32>, vector<6x1x2xf32> -> vector<6x16x2xf32>
    %46 = vector.extract_strided_slice %43 {offsets = [0, 0, 0], sizes = [4, 16, 2], strides = [1, 1, 1]} : vector<6x16x2xf32> to vector<4x16x2xf32>
    %47 = vector.extract_strided_slice %40 {offsets = [0, 0, 0], sizes = [4, 16, 2], strides = [1, 1, 1]} : vector<6x16x2xf32> to vector<4x16x2xf32>
    %48 = vector.extract_strided_slice %45 {offsets = [0, 0, 0], sizes = [4, 16, 2], strides = [1, 1, 1]} : vector<6x16x2xf32> to vector<4x16x2xf32>
    %49 = vector.extract_strided_slice %43 {offsets = [1, 0, 0], sizes = [4, 16, 2], strides = [1, 1, 1]} : vector<6x16x2xf32> to vector<4x16x2xf32>
    %50 = vector.extract_strided_slice %40 {offsets = [1, 0, 0], sizes = [4, 16, 2], strides = [1, 1, 1]} : vector<6x16x2xf32> to vector<4x16x2xf32>
    %51 = vector.extract_strided_slice %45 {offsets = [1, 0, 0], sizes = [4, 16, 2], strides = [1, 1, 1]} : vector<6x16x2xf32> to vector<4x16x2xf32>
    %52 = vector.extract_strided_slice %43 {offsets = [2, 0, 0], sizes = [4, 16, 2], strides = [1, 1, 1]} : vector<6x16x2xf32> to vector<4x16x2xf32>
    %53 = vector.extract_strided_slice %40 {offsets = [2, 0, 0], sizes = [4, 16, 2], strides = [1, 1, 1]} : vector<6x16x2xf32> to vector<4x16x2xf32>
    %54 = vector.extract_strided_slice %45 {offsets = [2, 0, 0], sizes = [4, 16, 2], strides = [1, 1, 1]} : vector<6x16x2xf32> to vector<4x16x2xf32>
    %55 = tpu.concatenate %46, %47, %48, %49, %50, %51, %52, %53, %54 in 2 : vector<4x16x2xf32>, vector<4x16x2xf32>, vector<4x16x2xf32>, vector<4x16x2xf32>, vector<4x16x2xf32>, vector<4x16x2xf32>, vector<4x16x2xf32>, vector<4x16x2xf32>, vector<4x16x2xf32> -> vector<4x16x18xf32>
    %56 = vector.shape_cast %55 : vector<4x16x18xf32> to vector<64x18xf32>
    %c0_21 = arith.constant 0 : index
    %c0_22 = arith.constant 0 : index
    %57 = vector.load %arg6[%c0_21, %c0_22] : memref<18x4xf32, #tpu.memory_space<vmem>>, vector<18x4xf32>
    %cst_23 = arith.constant dense<0.000000e+00> : vector<64x4xf32>
    %58 = tpu.matmul %56, %57, %cst_23 {dimension_numbers = #tpu.dot_dimension_numbers<[1], [0], [0], [1], [0, 0, 1, 1], [], []>} : vector<64x18xf32>, vector<18x4xf32>, vector<64x4xf32> -> vector<64x4xf32>
    %c0_24 = arith.constant 0 : index
    %c0_25 = arith.constant 0 : index
    %59 = vector.load %arg7[%c0_24, %c0_25] : memref<1x4xf32, #tpu.memory_space<vmem>>, vector<1x4xf32>
    %60 = vector.broadcast %59 : vector<1x4xf32> to vector<64x4xf32>
    %61 = arith.addf %58, %60 : vector<64x4xf32>
    %cst_26 = arith.constant 0.000000e+00 : f32
    %62 = vector.broadcast %cst_26 : f32 to vector<64x4xf32>
    %63 = arith.cmpf ogt, %61, %62 : vector<64x4xf32>
    %cst_27 = arith.constant 1.000000e-01 : f32
    %64 = vector.broadcast %cst_27 : f32 to vector<64x4xf32>
    %65 = arith.mulf %64, %61 : vector<64x4xf32>
    %66 = arith.select %63, %61, %65 : vector<64x4xi1>, vector<64x4xf32>
    %67 = arith.addf %66, %2 : vector<64x4xf32>
    %68 = vector.shape_cast %67 : vector<64x4xf32> to vector<4x16x4xf32>
    %c0_28 = arith.constant 0 : index
    %c0_29 = arith.constant 0 : index
    %c0_30 = arith.constant 0 : index
    %c0_31 = arith.constant 0 : index
    %69 = vector.load %arg8[%c0_28, %c0_29, %c0_30, %c0_31] : memref<1x4x16x4xf32, #tpu.memory_space<vmem>>, vector<1x4x16x4xf32>
    %70 = vector.shape_cast %69 : vector<1x4x16x4xf32> to vector<4x16x4xf32>
    %71 = vector.shape_cast %68 : vector<4x16x4xf32> to vector<1x4x16x4xf32>
    tpu.vector_store %arg8[%c0_28, %c0_29, %c0_30, %c0_31], %71 {strides = array<i32>} : memref<1x4x16x4xf32, #tpu.memory_space<vmem>>, vector<1x4x16x4xf32>,
    return
  }
  func.func @transform_0(%arg0: i32, %arg1: i32) -> (i32, i32, i32, i32) {
    %c0_i32 = arith.constant 0 : i32
    %c0_i32_0 = arith.constant 0 : i32
    %c0_i32_1 = arith.constant 0 : i32
    return %arg0, %arg1, %c0_i32, %c0_i32_0 : i32, i32, i32, i32
  }
  func.func @transform_1(%arg0: i32, %arg1: i32) -> (i32, i32, i32, i32) {
    %c0_i32 = arith.constant 0 : i32
    %c0_i32_0 = arith.constant 0 : i32
    %c0_i32_1 = arith.constant 0 : i32
    return %arg0, %arg1, %c0_i32, %c0_i32_0 : i32, i32, i32, i32
  }
  func.func @transform_2(%arg0: i32, %arg1: i32) -> (i32, i32) {
    %c0_i32 = arith.constant 0 : i32
    %c0_i32_0 = arith.constant 0 : i32
    %c0_i32_1 = arith.constant 0 : i32
    return %c0_i32, %c0_i32_0 : i32, i32
  }
  func.func @transform_3(%arg0: i32, %arg1: i32) -> (i32, i32) {
    %c0_i32 = arith.constant 0 : i32
    %c0_i32_0 = arith.constant 0 : i32
    %c0_i32_1 = arith.constant 0 : i32
    return %c0_i32, %c0_i32_0 : i32, i32
  }
  func.func @transform_4(%arg0: i32, %arg1: i32) -> (i32, i32) {
    %c0_i32 = arith.constant 0 : i32
    %c0_i32_0 = arith.constant 0 : i32
    %c0_i32_1 = arith.constant 0 : i32
    return %c0_i32, %c0_i32_0 : i32, i32
  }
  func.func @transform_5(%arg0: i32, %arg1: i32) -> (i32, i32) {
    %c0_i32 = arith.constant 0 : i32
    %c0_i32_0 = arith.constant 0 : i32
    %c0_i32_1 = arith.constant 0 : i32
    return %c0_i32, %c0_i32_0 : i32, i32
  }
  func.func @transform_6(%arg0: i32, %arg1: i32) -> (i32, i32, i32, i32) {
    %c0_i32 = arith.constant 0 : i32
    %c0_i32_0 = arith.constant 0 : i32
    %c0_i32_1 = arith.constant 0 : i32
    return %arg0, %arg1, %c0_i32, %c0_i32_0 : i32, i32, i32, i32
  }
}

module attributes {stable_mosaic.version = 11 : i64} {
  func.func @_resblock_kernel(%arg0: i32, %arg1: i32, %arg2: memref<1x4x16x4xf32, #tpu.memory_space<vmem>>, %arg3: memref<1x1x32x4xf32, #tpu.memory_space<vmem>>, %arg4: memref<4x2xf32, #tpu.memory_space<vmem>>, %arg5: memref<1x2xf32, #tpu.memory_space<vmem>>, %arg6: memref<18x4xf32, #tpu.memory_space<vmem>>, %arg7: memref<1x4xf32, #tpu.memory_space<vmem>>, %arg8: memref<1x4x16x4xf32, #tpu.memory_space<vmem>>) attributes {dimension_semantics = [#tpu.dimension_semantics<parallel>, #tpu.dimension_semantics<parallel>], iteration_bounds = array<i64: 2, 4>, scalar_prefetch = 0 : i64, scratch_operands = 0 : i64, tpu.core_type = #tpu.core_type<tc>, window_params = [{transform_indices = @transform_0, window_bounds = array<i64: 1, 4, 16, 4>}, {transform_indices = @transform_1, window_bounds = array<i64: 1, 1, 32, 4>}, {pipeline_mode = #tpu.pipeline_mode<synchronous>, transform_indices = @transform_2, window_bounds = array<i64: 4, 2>}, {pipeline_mode = #tpu.pipeline_mode<synchronous>, transform_indices = @transform_3, window_bounds = array<i64: 1, 2>}, {pipeline_mode = #tpu.pipeline_mode<synchronous>, transform_indices = @transform_4, window_bounds = array<i64: 18, 4>}, {pipeline_mode = #tpu.pipeline_mode<synchronous>, transform_indices = @transform_5, window_bounds = array<i64: 1, 4>}, {transform_indices = @transform_6, window_bounds = array<i64: 1, 4, 16, 4>}]} {
    %c0 = arith.constant 0 : index
    %c0_0 = arith.constant 0 : index
    %c0_1 = arith.constant 0 : index
    %c0_2 = arith.constant 0 : index
    %0 = vector.load %arg2[%c0, %c0_0, %c0_1, %c0_2] : memref<1x4x16x4xf32, #tpu.memory_space<vmem>>, vector<1x4x16x4xf32>
    %1 = vector.shape_cast %0 : vector<1x4x16x4xf32> to vector<4x16x4xf32>
    %2 = vector.shape_cast %1 : vector<4x16x4xf32> to vector<64x4xf32>
    %c0_3 = arith.constant 0 : index
    %c0_4 = arith.constant 0 : index
    %3 = vector.load %arg4[%c0_3, %c0_4] : memref<4x2xf32, #tpu.memory_space<vmem>>, vector<4x2xf32>
    %cst = arith.constant dense<0.000000e+00> : vector<64x2xf32>
    %4 = tpu.matmul %2, %3, %cst {dimension_numbers = #tpu.dot_dimension_numbers<[1], [0], [0], [1], [0, 0, 1, 1], [], []>} : vector<64x4xf32>, vector<4x2xf32>, vector<64x2xf32> -> vector<64x2xf32>
    %c0_5 = arith.constant 0 : index
    %c0_6 = arith.constant 0 : index
    %5 = vector.load %arg5[%c0_5, %c0_6] : memref<1x2xf32, #tpu.memory_space<vmem>>, vector<1x2xf32>
    %6 = vector.broadcast %5 : vector<1x2xf32> to vector<64x2xf32>
    %7 = arith.addf %4, %6 : vector<64x2xf32>
    %cst_7 = arith.constant 0.000000e+00 : f32
    %8 = vector.broadcast %cst_7 : f32 to vector<64x2xf32>
    %9 = arith.cmpf ogt, %7, %8 : vector<64x2xf32>
    %cst_8 = arith.constant 1.000000e-01 : f32
    %10 = vector.broadcast %cst_8 : f32 to vector<64x2xf32>
    %11 = arith.mulf %10, %7 : vector<64x2xf32>
    %12 = arith.select %9, %7, %11 : vector<64x2xi1>, vector<64x2xf32>
    %13 = vector.shape_cast %12 : vector<64x2xf32> to vector<4x16x2xf32>
    %c0_9 = arith.constant 0 : index
    %c0_10 = arith.constant 0 : index
    %c0_11 = arith.constant 0 : index
    %c0_12 = arith.constant 0 : index
    %14 = vector.load %arg3[%c0_9, %c0_10, %c0_11, %c0_12] : memref<1x1x32x4xf32, #tpu.memory_space<vmem>>, vector<1x1x32x4xf32>
    %15 = vector.shape_cast %14 : vector<1x1x32x4xf32> to vector<32x4xf32>
    %c0_13 = arith.constant 0 : index
    %c0_14 = arith.constant 0 : index
    %16 = vector.load %arg4[%c0_13, %c0_14] : memref<4x2xf32, #tpu.memory_space<vmem>>, vector<4x2xf32>
    %cst_15 = arith.constant dense<0.000000e+00> : vector<32x2xf32>
    %17 = tpu.matmul %15, %16, %cst_15 {dimension_numbers = #tpu.dot_dimension_numbers<[1], [0], [0], [1], [0, 0, 1, 1], [], []>} : vector<32x4xf32>, vector<4x2xf32>, vector<32x2xf32> -> vector<32x2xf32>
    %c0_16 = arith.constant 0 : index
    %c0_17 = arith.constant 0 : index
    %18 = vector.load %arg5[%c0_16, %c0_17] : memref<1x2xf32, #tpu.memory_space<vmem>>, vector<1x2xf32>
    %19 = vector.broadcast %18 : vector<1x2xf32> to vector<32x2xf32>
    %20 = arith.addf %17, %19 : vector<32x2xf32>
    %cst_18 = arith.constant 0.000000e+00 : f32
    %21 = vector.broadcast %cst_18 : f32 to vector<32x2xf32>
    %22 = arith.cmpf ogt, %20, %21 : vector<32x2xf32>
    %cst_19 = arith.constant 1.000000e-01 : f32
    %23 = vector.broadcast %cst_19 : f32 to vector<32x2xf32>
    %24 = arith.mulf %23, %20 : vector<32x2xf32>
    %25 = arith.select %22, %20, %24 : vector<32x2xi1>, vector<32x2xf32>
    %c0_i32 = arith.constant 0 : i32
    %26 = arith.cmpi sgt, %arg1, %c0_i32 : i32
    %27 = arith.extui %26 : i1 to i32
    %28 = arith.sitofp %27 : i32 to f32
    %c3_i32 = arith.constant 3 : i32
    %29 = arith.cmpi slt, %arg1, %c3_i32 : i32
    %30 = arith.extui %29 : i1 to i32
    %31 = arith.sitofp %30 : i32 to f32
    %32 = vector.extract_strided_slice %25 {offsets = [0, 0], sizes = [16, 2], strides = [1, 1]} : vector<32x2xf32> to vector<16x2xf32>
    %33 = vector.broadcast %28 : f32 to vector<16x2xf32>
    %34 = arith.mulf %32, %33 : vector<16x2xf32>
    %35 = vector.shape_cast %34 : vector<16x2xf32> to vector<1x16x2xf32>
    %36 = vector.extract_strided_slice %25 {offsets = [16, 0], sizes = [16, 2], strides = [1, 1]} : vector<32x2xf32> to vector<16x2xf32>
    %37 = vector.broadcast %31 : f32 to vector<16x2xf32>
    %38 = arith.mulf %36, %37 : vector<16x2xf32>
    %39 = vector.shape_cast %38 : vector<16x2xf32> to vector<1x16x2xf32>
    %40 = tpu.concatenate %35, %13, %39 in 0 : vector<1x16x2xf32>, vector<4x16x2xf32>, vector<1x16x2xf32> -> vector<6x16x2xf32>
    %cst_20 = arith.constant 0.000000e+00 : f32
    %41 = vector.broadcast %cst_20 : f32 to vector<6x1x2xf32>
    %42 = vector.extract_strided_slice %40 {offsets = [0, 0, 0], sizes = [6, 15, 2], strides = [1, 1, 1]} : vector<6x16x2xf32> to vector<6x15x2xf32>
    %43 = tpu.concatenate %41, %42 in 1 : vector<6x1x2xf32>, vector<6x15x2xf32> -> vector<6x16x2xf32>
    %44 = vector.extract_strided_slice %40 {offsets = [0, 1, 0], sizes = [6, 15, 2], strides = [1, 1, 1]} : vector<6x16x2xf32> to vector<6x15x2xf32>
    %45 = tpu.concatenate %44, %41 in 1 : vector<6x15x2xf32>, vector<6x1x2xf32> -> vector<6x16x2xf32>
    %46 = vector.extract_strided_slice %43 {offsets = [0, 0, 0], sizes = [4, 16, 2], strides = [1, 1, 1]} : vector<6x16x2xf32> to vector<4x16x2xf32>
    %47 = vector.extract_strided_slice %40 {offsets = [0, 0, 0], sizes = [4, 16, 2], strides = [1, 1, 1]} : vector<6x16x2xf32> to vector<4x16x2xf32>
    %48 = vector.extract_strided_slice %45 {offsets = [0, 0, 0], sizes = [4, 16, 2], strides = [1, 1, 1]} : vector<6x16x2xf32> to vector<4x16x2xf32>
    %49 = vector.extract_strided_slice %43 {offsets = [1, 0, 0], sizes = [4, 16, 2], strides = [1, 1, 1]} : vector<6x16x2xf32> to vector<4x16x2xf32>
    %50 = vector.extract_strided_slice %40 {offsets = [1, 0, 0], sizes = [4, 16, 2], strides = [1, 1, 1]} : vector<6x16x2xf32> to vector<4x16x2xf32>
    %51 = vector.extract_strided_slice %45 {offsets = [1, 0, 0], sizes = [4, 16, 2], strides = [1, 1, 1]} : vector<6x16x2xf32> to vector<4x16x2xf32>
    %52 = vector.extract_strided_slice %43 {offsets = [2, 0, 0], sizes = [4, 16, 2], strides = [1, 1, 1]} : vector<6x16x2xf32> to vector<4x16x2xf32>
    %53 = vector.extract_strided_slice %40 {offsets = [2, 0, 0], sizes = [4, 16, 2], strides = [1, 1, 1]} : vector<6x16x2xf32> to vector<4x16x2xf32>
    %54 = vector.extract_strided_slice %45 {offsets = [2, 0, 0], sizes = [4, 16, 2], strides = [1, 1, 1]} : vector<6x16x2xf32> to vector<4x16x2xf32>
    %55 = tpu.concatenate %46, %47, %48, %49, %50, %51, %52, %53, %54 in 2 : vector<4x16x2xf32>, vector<4x16x2xf32>, vector<4x16x2xf32>, vector<4x16x2xf32>, vector<4x16x2xf32>, vector<4x16x2xf32>, vector<4x16x2xf32>, vector<4x16x2xf32>, vector<4x16x2xf32> -> vector<4x16x18xf32>
    %56 = vector.shape_cast %55 : vector<4x16x18xf32> to vector<64x18xf32>
    %c0_21 = arith.constant 0 : index
    %c0_22 = arith.constant 0 : index
    %57 = vector.load %arg6[%c0_21, %c0_22] : memref<18x4xf32, #tpu.memory_space<vmem>>, vector<18x4xf32>
    %cst_23 = arith.constant dense<0.000000e+00> : vector<64x4xf32>
    %58 = tpu.matmul %56, %57, %cst_23 {dimension_numbers = #tpu.dot_dimension_numbers<[1], [0], [0], [1], [0, 0, 1, 1], [], []>} : vector<64x18xf32>, vector<18x4xf32>, vector<64x4xf32> -> vector<64x4xf32>
    %c0_24 = arith.constant 0 : index
    %c0_25 = arith.constant 0 : index
    %59 = vector.load %arg7[%c0_24, %c0_25] : memref<1x4xf32, #tpu.memory_space<vmem>>, vector<1x4xf32>
    %60 = vector.broadcast %59 : vector<1x4xf32> to vector<64x4xf32>
    %61 = arith.addf %58, %60 : vector<64x4xf32>
    %cst_26 = arith.constant 0.000000e+00 : f32
    %62 = vector.broadcast %cst_26 : f32 to vector<64x4xf32>
    %63 = arith.cmpf ogt, %61, %62 : vector<64x4xf32>
    %cst_27 = arith.constant 1.000000e-01 : f32
    %64 = vector.broadcast %cst_27 : f32 to vector<64x4xf32>
    %65 = arith.mulf %64, %61 : vector<64x4xf32>
    %66 = arith.select %63, %61, %65 : vector<64x4xi1>, vector<64x4xf32>
    %67 = arith.addf %66, %2 : vector<64x4xf32>
    %68 = vector.shape_cast %67 : vector<64x4xf32> to vector<4x16x4xf32>
    %c0_28 = arith.constant 0 : index
    %c0_29 = arith.constant 0 : index
    %c0_30 = arith.constant 0 : index
    %c0_31 = arith.constant 0 : index
    %69 = vector.load %arg8[%c0_28, %c0_29, %c0_30, %c0_31] : memref<1x4x16x4xf32, #tpu.memory_space<vmem>>, vector<1x4x16x4xf32>
    %70 = vector.shape_cast %69 : vector<1x4x16x4xf32> to vector<4x16x4xf32>
    %71 = vector.shape_cast %68 : vector<4x16x4xf32> to vector<1x4x16x4xf32>
    tpu.vector_store %arg8[%c0_28, %c0_29, %c0_30, %c0_31], %71 {strides = array<i32>} : memref<1x4x16x4xf32, #tpu.memory_space<vmem>>, vector<1x4x16x4xf32>,
    return
  }
  func.func @transform_0(%arg0: i32, %arg1: i32) -> (i32, i32, i32, i32) {
    %c0_i32 = arith.constant 0 : i32
    %c0_i32_0 = arith.constant 0 : i32
    %c0_i32_1 = arith.constant 0 : i32
    return %arg0, %arg1, %c0_i32, %c0_i32_0 : i32, i32, i32, i32
  }
  func.func @transform_1(%arg0: i32, %arg1: i32) -> (i32, i32, i32, i32) {
    %c0_i32 = arith.constant 0 : i32
    %c0_i32_0 = arith.constant 0 : i32
    %c0_i32_1 = arith.constant 0 : i32
    return %arg0, %arg1, %c0_i32, %c0_i32_0 : i32, i32, i32, i32
  }
  func.func @transform_2(%arg0: i32, %arg1: i32) -> (i32, i32) {
    %c0_i32 = arith.constant 0 : i32
    %c0_i32_0 = arith.constant 0 : i32
    %c0_i32_1 = arith.constant 0 : i32
    return %c0_i32, %c0_i32_0 : i32, i32
  }
  func.func @transform_3(%arg0: i32, %arg1: i32) -> (i32, i32) {
    %c0_i32 = arith.constant 0 : i32
    %c0_i32_0 = arith.constant 0 : i32
    %c0_i32_1 = arith.constant 0 : i32
    return %c0_i32, %c0_i32_0 : i32, i32
  }
  func.func @transform_4(%arg0: i32, %arg1: i32) -> (i32, i32) {
    %c0_i32 = arith.constant 0 : i32
    %c0_i32_0 = arith.constant 0 : i32
    %c0_i32_1 = arith.constant 0 : i32
    return %c0_i32, %c0_i32_0 : i32, i32
  }
  func.func @transform_5(%arg0: i32, %arg1: i32) -> (i32, i32) {
    %c0_i32 = arith.constant 0 : i32
    %c0_i32_0 = arith.constant 0 : i32
    %c0_i32_1 = arith.constant 0 : i32
    return %c0_i32, %c0_i32_0 : i32, i32
  }
  func.func @transform_6(%arg0: i32, %arg1: i32) -> (i32, i32, i32, i32) {
    %c0_i32 = arith.constant 0 : i32
    %c0_i32_0 = arith.constant 0 : i32
    %c0_i32_1 = arith.constant 0 : i32
    return %arg0, %arg1, %c0_i32, %c0_i32_0 : i32, i32, i32, i32
  }
}

</mosaic_0001>

<llo_original>
// kernel: tpu_custom_call.1
$region0: #{tpu_custom_call.1}
  #allocation0 [shape = 'u32[]', space=smem, size = 0x4, offset = 0x4, fixed_abs, tag = 'smem constant byte address 0x4 - core index']
  #allocation1 [shape = 'u32[72,128]{1,0:T(1,128)}', space=vmem, size = 0x9000, scoped, tag = 'internal scratch']
  %s0 = inlined_call_operand.vmem [shape: f32[2,16,16,4], index: 0, kind: input, shape index: {}]
  %s1 = inlined_call_operand.vmem [shape: f32[2,4,32,4], index: 1, kind: input, shape index: {}]
  %s2 = inlined_call_operand.vmem [shape: f32[4,2], index: 2, kind: input, shape index: {}]
  %s3 = inlined_call_operand.vmem [shape: f32[1,2], index: 3, kind: input, shape index: {}]
  %s4 = inlined_call_operand.vmem [shape: f32[18,4], index: 4, kind: input, shape index: {}]
  %s5 = inlined_call_operand.vmem [shape: f32[1,4], index: 5, kind: input, shape index: {}]
  %s6 = inlined_call_operand.vmem [shape: f32[2,16,16,4], index: 6, kind: output, shape index: {}]
  %s7 = sld [smem:[#allocation0]]
  $region57: #{tpu_custom_call.1} parent=0
    _
  %s9 = ssub.s32 1, %s7
  %s10 = scalar_select 0, %s9, %s7
  loop: start=0, step=1, limit=10
  $region2: #{tpu_custom_call.1} parent=0 // loop_pre_header
    _
  $region3: #{tpu_custom_call.1} parent=0 // loop_header
    %s12 = sphi 0, %s16
    %p13 = scmp.ge.s32.totalorder %s12, 10
    %s19 = sphi 0, %s31
    %s20 = sphi 0, %s27
    %s21 = sphi 0, %s19
    %s22 = sphi 0, %s20
    %s23 = sphi 0, %s21
    %s24 = sphi 0, %s22
    %s36 = sphi 0, %s38
    %s39 = sphi 0, %s36
    %s40 = sphi 0, %s39
    %s56 = sphi 0, %s40
    %s64 = sphi 0, %s66
    %s67 = sphi 0, %s64
    %s68 = sphi 0, %s67
    %s84 = sphi 0, %s68
    %s88 = sphi 0, %s88
    %s90 = sphi 0, %s88
    %s91 = sphi 0, %s90
    %s105 = sphi 0, %s91
    %s109 = sphi 0, %s109
    %s111 = sphi 0, %s109
    %s112 = sphi 0, %s111
    %s126 = sphi 0, %s112
    %s130 = sphi 0, %s130
    %s132 = sphi 0, %s130
    %s133 = sphi 0, %s132
    %s147 = sphi 0, %s133
    %s151 = sphi 0, %s151
    %s153 = sphi 0, %s151
    %s154 = sphi 0, %s153
    %s168 = sphi 0, %s154
    %s176 = sphi 0, %s178
    %s179 = sphi 0, %s176
    %s180 = sphi 0, %s179
    %s196 = sphi 0, %s180
  $region4: #{tpu_custom_call.1} parent=0 // loop_header_branch
    %15 = sbr.rel (%p13) target = $region8
  $region5: #{tpu_custom_call.1} parent=0 // loop_body
    %s17 = ssub.s32 %s12, 1
    %s18 = ssub.s32 %s12, 2
    %s25 = sadd.s32 1, %s20
    %p26 = scmp.ge.s32.totalorder %s25, 4
    %s27 = scalar_select %p26, 0, %s25
    %s28 = sadd.s32 1, %s19
    %s29 = scalar_select %p26, %s28, %s19
    %p30 = scmp.ge.s32.totalorder %s29, 2
    %s31 = scalar_select %p30, 0, %s29
    %s32 = ssub.s32 %s19, %s31
    %s33 = ssub.s32 %s20, %s27
    %s34 = sor.u32 %s32, %s33
    %p35 = scmp.eq.s32.totalorder %s34, 0
    %s37 = sadd.s32 %s36, 1
    %s38 = scalar_select %p35, %s36, %s37
    %p41 = pneg %p35
    %p42 = scmp.eq.s32.totalorder %s12, 7
    %p43 = por %p41, %p42
    %p44 = scmp.ne.s32.totalorder %s36, %s39
    %p45 = scmp.eq.s32.totalorder %s12, 0
    %p46 = por %p44, %p45
    %p47 = scmp.ne.s32.totalorder %s36, %s39
    %p48 = scmp.eq.s32.totalorder %s17, 7
    %p49 = por %p47, %p48
    %p50 = scmp.ne.s32.totalorder %s39, %s40
    %p51 = scmp.eq.s32.totalorder %s17, 0
    %p52 = por %p50, %p51
    %p53 = scmp.ne.s32.totalorder %s39, %s40
    %p54 = scmp.eq.s32.totalorder %s18, 7
    %p55 = por %p53, %p54
    %p57 = scmp.ne.s32.totalorder %s40, %s56
    %p58 = scmp.eq.s32.totalorder %s18, 0
    %p59 = por %p57, %p58
    %s60 = ssub.s32 %s19, %s31
    %s61 = ssub.s32 %s20, %s27
    %s62 = sor.u32 %s60, %s61
    %p63 = scmp.eq.s32.totalorder %s62, 0
    %s65 = sadd.s32 %s64, 1
    %s66 = scalar_select %p63, %s64, %s65
    %p69 = pneg %p63
    %p70 = scmp.eq.s32.totalorder %s12, 7
    %p71 = por %p69, %p70
    %p72 = scmp.ne.s32.totalorder %s64, %s67
    %p73 = scmp.eq.s32.totalorder %s12, 0
    %p74 = por %p72, %p73
    %p75 = scmp.ne.s32.totalorder %s64, %s67
    %p76 = scmp.eq.s32.totalorder %s17, 7
    %p77 = por %p75, %p76
    %p78 = scmp.ne.s32.totalorder %s67, %s68
    %p79 = scmp.eq.s32.totalorder %s17, 0
    %p80 = por %p78, %p79
    %p81 = scmp.ne.s32.totalorder %s67, %s68
    %p82 = scmp.eq.s32.totalorder %s18, 7
    %p83 = por %p81, %p82
    %p85 = scmp.ne.s32.totalorder %s68, %s84
    %p86 = scmp.eq.s32.totalorder %s18, 0
    %p87 = por %p85, %p86
    %s89 = sadd.s32 %s88, 1
    %p92 = scmp.eq.s32.totalorder %s12, 7
    %p93 = scmp.ne.s32.totalorder %s88, %s90
    %p94 = scmp.eq.s32.totalorder %s12, 0
    %p95 = por %p93, %p94
    %p96 = scmp.ne.s32.totalorder %s88, %s90
    %p97 = scmp.eq.s32.totalorder %s17, 7
    %p98 = por %p96, %p97
    %p99 = scmp.ne.s32.totalorder %s90, %s91
    %p100 = scmp.eq.s32.totalorder %s17, 0
    %p101 = por %p99, %p100
    %p102 = scmp.ne.s32.totalorder %s90, %s91
    %p103 = scmp.eq.s32.totalorder %s18, 7
    %p104 = por %p102, %p103
    %p106 = scmp.ne.s32.totalorder %s91, %s105
    %p107 = scmp.eq.s32.totalorder %s18, 0
    %p108 = por %p106, %p107
    %s110 = sadd.s32 %s109, 1
    %p113 = scmp.eq.s32.totalorder %s12, 7
    %p114 = scmp.ne.s32.totalorder %s109, %s111
    %p115 = scmp.eq.s32.totalorder %s12, 0
    %p116 = por %p114, %p115
    %p117 = scmp.ne.s32.totalorder %s109, %s111
    %p118 = scmp.eq.s32.totalorder %s17, 7
    %p119 = por %p117, %p118
    %p120 = scmp.ne.s32.totalorder %s111, %s112
    %p121 = scmp.eq.s32.totalorder %s17, 0
    %p122 = por %p120, %p121
    %p123 = scmp.ne.s32.totalorder %s111, %s112
    %p124 = scmp.eq.s32.totalorder %s18, 7
    %p125 = por %p123, %p124
    %p127 = scmp.ne.s32.totalorder %s112, %s126
    %p128 = scmp.eq.s32.totalorder %s18, 0
    %p129 = por %p127, %p128
    %s131 = sadd.s32 %s130, 1
    %p134 = scmp.eq.s32.totalorder %s12, 7
    %p135 = scmp.ne.s32.totalorder %s130, %s132
    %p136 = scmp.eq.s32.totalorder %s12, 0
    %p137 = por %p135, %p136
    %p138 = scmp.ne.s32.totalorder %s130, %s132
    %p139 = scmp.eq.s32.totalorder %s17, 7
    %p140 = por %p138, %p139
    %p141 = scmp.ne.s32.totalorder %s132, %s133
    %p142 = scmp.eq.s32.totalorder %s17, 0
    %p143 = por %p141, %p142
    %p144 = scmp.ne.s32.totalorder %s132, %s133
    %p145 = scmp.eq.s32.totalorder %s18, 7
    %p146 = por %p144, %p145
    %p148 = scmp.ne.s32.totalorder %s133, %s147
    %p149 = scmp.eq.s32.totalorder %s18, 0
    %p150 = por %p148, %p149
    %s152 = sadd.s32 %s151, 1
    %p155 = scmp.eq.s32.totalorder %s12, 7
    %p156 = scmp.ne.s32.totalorder %s151, %s153
    %p157 = scmp.eq.s32.totalorder %s12, 0
    %p158 = por %p156, %p157
    %p159 = scmp.ne.s32.totalorder %s151, %s153
    %p160 = scmp.eq.s32.totalorder %s17, 7
    %p161 = por %p159, %p160
    %p162 = scmp.ne.s32.totalorder %s153, %s154
    %p163 = scmp.eq.s32.totalorder %s17, 0
    %p164 = por %p162, %p163
    %p165 = scmp.ne.s32.totalorder %s153, %s154
    %p166 = scmp.eq.s32.totalorder %s18, 7
    %p167 = por %p165, %p166
    %p169 = scmp.ne.s32.totalorder %s154, %s168
    %p170 = scmp.eq.s32.totalorder %s18, 0
    %p171 = por %p169, %p170
    %s172 = ssub.s32 %s19, %s31
    %s173 = ssub.s32 %s20, %s27
    %s174 = sor.u32 %s172, %s173
    %p175 = scmp.eq.s32.totalorder %s174, 0
    %s177 = sadd.s32 %s176, 1
    %s178 = scalar_select %p175, %s176, %s177
    %p181 = pneg %p175
    %p182 = scmp.eq.s32.totalorder %s12, 7
    %p183 = por %p181, %p182
    %p184 = scmp.ne.s32.totalorder %s176, %s179
    %p185 = scmp.eq.s32.totalorder %s12, 0
    %p186 = por %p184, %p185
    %p187 = scmp.ne.s32.totalorder %s176, %s179
    %p188 = scmp.eq.s32.totalorder %s17, 7
    %p189 = por %p187, %p188
    %p190 = scmp.ne.s32.totalorder %s179, %s180
    %p191 = scmp.eq.s32.totalorder %s17, 0
    %p192 = por %p190, %p191
    %p193 = scmp.ne.s32.totalorder %s179, %s180
    %p194 = scmp.eq.s32.totalorder %s18, 7
    %p195 = por %p193, %p194
    %p197 = scmp.ne.s32.totalorder %s180, %s196
    %p198 = scmp.eq.s32.totalorder %s18, 0
    %p199 = por %p197, %p198
    %p200 = scmp.le.s32.totalorder 1, %s12
    %p201 = scmp.lt.s32.totalorder %s12, 9
    %p202 = pnand %p200, %p201
    %p203 = pneg %p202
    // Predicated region
    $region9: #{tpu_custom_call.1} parent=5 // pred_check
      _
    $region10: #{tpu_custom_call.1} parent=5 // pred_check_branch
      %205 = sbr.rel (%p202) target = $region12
    $region11: #{tpu_custom_call.1} parent=5 // pred_region
      %s206 = ssub.s32 %s12, 1
      // Predicated region
      $region13: #{tpu_custom_call.1} parent=11 // pred_check
        %p207 = pneg %p101
      $region14: #{tpu_custom_call.1} parent=11 // pred_check_branch
        %209 = sbr.rel (%p207) target = $region16
      $region15: #{tpu_custom_call.1} parent=11 // pred_region
        _
      $region16: #{tpu_custom_call.1} parent=11 // pred_fallthru
        _
      // Predicated region
      $region17: #{tpu_custom_call.1} parent=11 // pred_check
        %p210 = pneg %p122
      $region18: #{tpu_custom_call.1} parent=11 // pred_check_branch
        %212 = sbr.rel (%p210) target = $region20
      $region19: #{tpu_custom_call.1} parent=11 // pred_region
        _
      $region20: #{tpu_custom_call.1} parent=11 // pred_fallthru
        _
      // Predicated region
      $region21: #{tpu_custom_call.1} parent=11 // pred_check
        %p213 = pneg %p143
      $region22: #{tpu_custom_call.1} parent=11 // pred_check_branch
        %215 = sbr.rel (%p213) target = $region24
      $region23: #{tpu_custom_call.1} parent=11 // pred_region
        _
      $region24: #{tpu_custom_call.1} parent=11 // pred_fallthru
        _
      // Predicated region
      $region25: #{tpu_custom_call.1} parent=11 // pred_check
        %p216 = pneg %p164
      $region26: #{tpu_custom_call.1} parent=11 // pred_check_branch
        %218 = sbr.rel (%p216) target = $region28
      $region27: #{tpu_custom_call.1} parent=11 // pred_region
        _
      $region28: #{tpu_custom_call.1} parent=11 // pred_fallthru
        _
    $region12: #{tpu_custom_call.1} parent=5 // pred_fallthru
      _
    %p219 = scmp.lt.s32.totalorder %s12, 8
    // Predicated region
    $region29: #{tpu_custom_call.1} parent=5 // pred_check
      %p220 = pneg %p219
    $region30: #{tpu_custom_call.1} parent=5 // pred_check_branch
      %222 = sbr.rel (%p220) target = $region32
    $region31: #{tpu_custom_call.1} parent=5 // pred_region
      // Predicated region
      $region33: #{tpu_custom_call.1} parent=31 // pred_check
        %p223 = pneg %p46
      $region34: #{tpu_custom_call.1} parent=31 // pred_check_branch
        %225 = sbr.rel (%p223) target = $region36
      $region35: #{tpu_custom_call.1} parent=31 // pred_region
        %s226 = smul.u32 4, %s20
        %p227 = scmp.lt.s32.totalorder %s19, 1
        %s228 = scalar_select %p227, %s19, 1
        %p229 = scmp.lt.s32.totalorder %s226, 15
        %s230 = scalar_select %p229, %s226, 15
        %s231 = smul.addr %s230, 2
        %s232 = smul.addr %s228, 32
        %s233 = sadd.s32 %s231, %s232
        %s234 = smul.addr %s233, 8
        %s235 = scalar_lea.vmem %s0, %s234
        %s236 = smul.u32 4, %s20
      $region36: #{tpu_custom_call.1} parent=31 // pred_fallthru
        _
      // Predicated region
      $region37: #{tpu_custom_call.1} parent=31 // pred_check
        %p237 = pneg %p74
      $region38: #{tpu_custom_call.1} parent=31 // pred_check_branch
        %239 = sbr.rel (%p237) target = $region40
      $region39: #{tpu_custom_call.1} parent=31 // pred_region
        %p240 = scmp.lt.s32.totalorder %s19, 1
        %s241 = scalar_select %p240, %s19, 1
        %p242 = scmp.lt.s32.totalorder %s20, 3
        %s243 = scalar_select %p242, %s20, 3
        %s244 = smul.addr %s243, 4
        %s245 = smul.addr %s241, 16
        %s246 = sadd.s32 %s244, %s245
        %s247 = smul.addr %s246, 8
        %s248 = scalar_lea.vmem %s1, %s247
      $region40: #{tpu_custom_call.1} parent=31 // pred_fallthru
        _
    $region32: #{tpu_custom_call.1} parent=5 // pred_fallthru
      _
    %p249 = scmp.le.s32.totalorder 1, %s12
    %p250 = scmp.lt.s32.totalorder %s12, 9
    %p251 = pnand %p249, %p250
    %p252 = pneg %p251
    // Predicated region
    $region41: #{tpu_custom_call.1} parent=5 // pred_check
      _
    $region42: #{tpu_custom_call.1} parent=5 // pred_check_branch
      %254 = sbr.rel (%p251) target = $region44
    $region43: #{tpu_custom_call.1} parent=5 // pred_region
      %s255 = ssub.s32 %s12, 1
      %s256 = smul.u32 4, %s22
      %p257 = scmp.lt.s32.totalorder %s21, 1
      %s258 = scalar_select %p257, %s21, 1
      %p259 = scmp.lt.s32.totalorder %s256, 15
      %s260 = scalar_select %p259, %s256, 15
      %s261 = smul.addr %s260, 2
      %s262 = smul.addr %s258, 32
      %s263 = sadd.s32 %s261, %s262
      %s264 = smul.addr %s263, 8
      %s265 = scalar_lea.vmem %s0, %s264
      %p266 = pneg %p52
      %p267 = pneg %p49
      %p268 = scmp.lt.s32.totalorder %s21, 1
      %s269 = scalar_select %p268, %s21, 1
      %p270 = scmp.lt.s32.totalorder %s22, 3
      %s271 = scalar_select %p270, %s22, 3
      %s272 = smul.addr %s271, 4
      %s273 = smul.addr %s269, 16
      %s274 = sadd.s32 %s272, %s273
      %s275 = smul.addr %s274, 8
      %s276 = scalar_lea.vmem %s1, %s275
      %p277 = pneg %p80
      %p278 = pneg %p77
      %p279 = pneg %p101
      %p280 = pneg %p98
      %p281 = pneg %p122
      %p282 = pneg %p119
      %p283 = pneg %p143
      %p284 = pneg %p140
      %p285 = pneg %p164
      %p286 = pneg %p161
      %p287 = pneg %p192
      %p288 = pneg %p189
      %s289 = smul.u32 4, %s22
      %p290 = scmp.lt.s32.totalorder %s21, 1
      %s291 = scalar_select %p290, %s21, 1
      %p292 = scmp.lt.s32.totalorder %s289, 15
      %s293 = scalar_select %p292, %s289, 15
      %s294 = smul.addr %s293, 2
      %s295 = smul.addr %s291, 32
      %s296 = sadd.s32 %s294, %s295
      %s297 = smul.addr %s296, 8
      %s298 = scalar_lea.vmem %s6, %s297
      %s299 = smul.u32 4, %s22
      %p300 = scmp.lt.s32.totalorder %s21, 1
      %s301 = scalar_select %p300, %s21, 1
      %p302 = scmp.lt.s32.totalorder %s299, 15
      %s303 = scalar_select %p302, %s299, 15
      %s304 = smul.addr %s303, 2
      %s305 = smul.addr %s301, 32
      %s306 = sadd.s32 %s304, %s305
      %s307 = smul.addr %s306, 8
      %s308 = scalar_lea.vmem %s0, %s307
      %s309 = smul.u32 4, %s22
      %p310 = scmp.lt.s32.totalorder %s21, 1
      %s311 = scalar_select %p310, %s21, 1
      %p312 = scmp.lt.s32.totalorder %s22, 3
      %s313 = scalar_select %p312, %s22, 3
      %s314 = smul.addr %s313, 4
      %s315 = smul.addr %s311, 16
      %s316 = sadd.s32 %s314, %s315
      %s317 = smul.addr %s316, 8
      %s318 = scalar_lea.vmem %s1, %s317
      %s319 = smul.u32 4, %s22
      %p320 = scmp.lt.s32.totalorder %s21, 1
      %s321 = scalar_select %p320, %s21, 1
      %p322 = scmp.lt.s32.totalorder %s319, 15
      %s323 = scalar_select %p322, %s319, 15
      %s324 = smul.addr %s323, 2
      %s325 = smul.addr %s321, 32
      %s326 = sadd.s32 %s324, %s325
      %s327 = smul.addr %s326, 8
      %s328 = scalar_lea.vmem %s6, %s327
      %s329 = smul.u32 4, %s22
      %v330 = vld [vmem:[%s308] sm:$0xff]
      %v331 = vld [vmem:[%s308 + $0x8] sm:$0xff]
      %v332 = vld [vmem:[%s308 + $0x10] sm:$0xff]
      %v333 = vld [vmem:[%s308 + $0x18] sm:$0xff]
      %v334 = vld [vmem:[%s308 + $0x20] sm:$0xff]
      %v335 = vld [vmem:[%s308 + $0x28] sm:$0xff]
      %v336 = vld [vmem:[%s308 + $0x30] sm:$0xff]
      %v337 = vld [vmem:[%s308 + $0x38] sm:$0xff]
      %v338 = vld [vmem:[%s2] sm:$0xf]
      %v339 = vld [vmem:[%s3] sm:$0x1]
      %v341 = vperm.slane %v339, 0
      %vm343 = vcmask 31744
      %v345 = vsel %vm343, %v330, 0
      %v348 = vsel %vm343, %v331, 0
      %v351 = vsel %vm343, %v332, 0
      %v354 = vsel %vm343, %v333, 0
      %v357 = vsel %vm343, %v334, 0
      %v360 = vsel %vm343, %v335, 0
      %v363 = vsel %vm343, %v336, 0
      %v366 = vsel %vm343, %v337, 0
      %vm368 = vcmask 1043456
      %v370 = vsel %vm368, %v338, 0
      %372 = vmatpush.msra.mxu0 0.0
      %373 = vmatpush.msra.mxu0 0.0
      %374 = vmatpush.msra.mxu0 0.0
      %375 = vmatpush.msra.mxu0 0.0
      %376 = vmatpush.msra.mxu0 0.0
      %377 = vmatpush.msra.mxu0 0.0
      %378 = vmatpush.msra.mxu0 0.0
      %379 = vmatpush.msra.mxu0 0.0
      %380 = vmatpush.msra.mxu0 0.0
      %381 = vmatpush.msra.mxu0 0.0
      %382 = vmatpush.msra.mxu0 0.0
      %383 = vmatpush.msra.mxu0 0.0
      %384 = vmatpush.msra.mxu0 0.0
      %385 = vmatpush.msra.mxu0 0.0
      %386 = vmatpush.msra.mxu0 0.0
      %387 = vmatpush.msra.mxu0 %v370
      %388 = vmatmul.f32.gmra.mxu0 %v345
      %v389 = vpop.f32.mrf.mxu0
      %v390 = vadd.f32 %v341, %v389
      %391 = vmatmul.f32.gmra.mxu0 %v348
      %v392 = vpop.f32.mrf.mxu0
      %v393 = vadd.f32 %v341, %v392
      %394 = vmatmul.f32.gmra.mxu0 %v351
      %v395 = vpop.f32.mrf.mxu0
      %v396 = vadd.f32 %v341, %v395
      %397 = vmatmul.f32.gmra.mxu0 %v354
      %v398 = vpop.f32.mrf.mxu0
      %v399 = vadd.f32 %v341, %v398
      %400 = vmatmul.f32.gmra.mxu0 %v357
      %v401 = vpop.f32.mrf.mxu0
      %v402 = vadd.f32 %v341, %v401
      %403 = vmatmul.f32.gmra.mxu0 %v360
      %v404 = vpop.f32.mrf.mxu0
      %v405 = vadd.f32 %v341, %v404
      %406 = vmatmul.f32.gmra.mxu0 %v363
      %v407 = vpop.f32.mrf.mxu0
      %v408 = vadd.f32 %v341, %v407
      %409 = vmatmul.f32.gmra.mxu0 %v366
      %v410 = vpop.f32.mrf.mxu0
      %v411 = vadd.f32 %v341, %v410
      %412 = vdwg.mxu0
      %vm413 = vcmp.gt.f32.partialorder %v390, 0.0
      %vm414 = vcmp.gt.f32.partialorder %v393, 0.0
      %vm415 = vcmp.gt.f32.partialorder %v396, 0.0
      %vm416 = vcmp.gt.f32.partialorder %v399, 0.0
      %vm417 = vcmp.gt.f32.partialorder %v402, 0.0
      %vm418 = vcmp.gt.f32.partialorder %v405, 0.0
      %vm419 = vcmp.gt.f32.partialorder %v408, 0.0
      %vm420 = vcmp.gt.f32.partialorder %v411, 0.0
      %v421 = vmul.f32 %v390, 0.1
      %v422 = vmul.f32 %v393, 0.1
      %v423 = vmul.f32 %v396, 0.1
      %v424 = vmul.f32 %v399, 0.1
      %v425 = vmul.f32 %v402, 0.1
      %v426 = vmul.f32 %v405, 0.1
      %v427 = vmul.f32 %v408, 0.1
      %v428 = vmul.f32 %v411, 0.1
      %v429 = vsel %vm413, %v390, %v421
      %v430 = vsel %vm414, %v393, %v422
      %v431 = vsel %vm415, %v396, %v423
      %v432 = vsel %vm416, %v399, %v424
      %v433 = vsel %vm417, %v402, %v425
      %v434 = vsel %vm418, %v405, %v426
      %v435 = vsel %vm419, %v408, %v427
      %v436 = vsel %vm420, %v411, %v428
      %v437 = vld [vmem:[%s318] sm:$0xff]
      %v438 = vld [vmem:[%s318 + $0x8] sm:$0xff]
      %v439 = vld [vmem:[%s318 + $0x10] sm:$0xff]
      %v440 = vld [vmem:[%s318 + $0x18] sm:$0xff]
      %v442 = vsel %vm343, %v437, 0
      %v445 = vsel %vm343, %v438, 0
      %v448 = vsel %vm343, %v439, 0
      %v451 = vsel %vm343, %v440, 0
      %453 = vmatpush.msra.mxu0 0.0
      %454 = vmatpush.msra.mxu0 0.0
      %455 = vmatpush.msra.mxu0 0.0
      %456 = vmatpush.msra.mxu0 0.0
      %457 = vmatpush.msra.mxu0 0.0
      %458 = vmatpush.msra.mxu0 0.0
      %459 = vmatpush.msra.mxu0 0.0
      %460 = vmatpush.msra.mxu0 0.0
      %461 = vmatpush.msra.mxu0 0.0
      %462 = vmatpush.msra.mxu0 0.0
      %463 = vmatpush.msra.mxu0 0.0
      %464 = vmatpush.msra.mxu0 0.0
      %465 = vmatpush.msra.mxu0 0.0
      %466 = vmatpush.msra.mxu0 0.0
      %467 = vmatpush.msra.mxu0 0.0
      %468 = vmatpush.msra.mxu0 %v370
      %469 = vmatmul.f32.gmra.mxu0 %v442
      %v470 = vpop.f32.mrf.mxu0
      %v471 = vadd.f32 %v341, %v470
      %472 = vmatmul.f32.gmra.mxu0 %v445
      %v473 = vpop.f32.mrf.mxu0
      %v474 = vadd.f32 %v341, %v473
      %475 = vmatmul.f32.gmra.mxu0 %v448
      %v476 = vpop.f32.mrf.mxu0
      %v477 = vadd.f32 %v341, %v476
      %478 = vmatmul.f32.gmra.mxu0 %v451
      %v479 = vpop.f32.mrf.mxu0
      %v480 = vadd.f32 %v341, %v479
      %481 = vdwg.mxu0
      %vm482 = vcmp.gt.f32.partialorder %v471, 0.0
      %vm483 = vcmp.gt.f32.partialorder %v474, 0.0
      %vm484 = vcmp.gt.f32.partialorder %v477, 0.0
      %vm485 = vcmp.gt.f32.partialorder %v480, 0.0
      %v486 = vmul.f32 %v471, 0.1
      %v487 = vmul.f32 %v474, 0.1
      %v488 = vmul.f32 %v477, 0.1
      %v489 = vmul.f32 %v480, 0.1
      %v490 = vsel %vm482, %v471, %v486
      %v491 = vsel %vm483, %v474, %v487
      %v492 = vsel %vm484, %v477, %v488
      %v493 = vsel %vm485, %v480, %v489
      %p494 = scmp.gt.s32.totalorder %s22, 0
      %s495 = scalar_select %p494, 1, 0
      %s496 = scvt.s32.f32 %s495
      %p497 = scmp.lt.s32.totalorder %s22, 3
      %s498 = scalar_select %p497, 1, 0
      %s499 = scvt.s32.f32 %s498
      %v500 = vstv %s496
      %v501 = vmul.f32 %v490, %v500
      %v502 = vmul.f32 %v491, %v500
      %v503 = vstv %s499
      %v504 = vmul.f32 %v492, %v503
      %v505 = vmul.f32 %v493, %v503
      %vm518 = vcmask 1040384
      %v519 = vrot.slane %v501, 7
      %v520 = vrot.slane %v502, 7
      %v521 = vsel %vm518, %v519, %v520
      %v522 = vrot.slane %v429, 7
      %v523 = vrot.slane %v430, 7
      %v524 = vsel %vm518, %v522, %v523
      %v525 = vrot.slane %v431, 7
      %v526 = vrot.slane %v432, 7
      %v527 = vsel %vm518, %v525, %v526
      %v528 = vrot.slane %v433, 7
      %v529 = vrot.slane %v434, 7
      %v530 = vsel %vm518, %v528, %v529
      %v531 = vrot.slane %v435, 7
      %v532 = vrot.slane %v436, 7
      %v533 = vsel %vm518, %v531, %v532
      %v534 = vrot.slane %v504, 7
      %v535 = vrot.slane %v505, 7
      %v536 = vsel %vm518, %v534, %v535
      %v547 = vsel %vm518, 0.0, %v519
      %v548 = vsel %vm518, 0.0, %v522
      %v549 = vsel %vm518, 0.0, %v525
      %v550 = vsel %vm518, 0.0, %v528
      %v551 = vsel %vm518, 0.0, %v531
      %v552 = vsel %vm518, 0.0, %v534
      %vm553 = vcmask 1046528
      %v554 = vrot.slane %v501, 1
      %v555 = vrot.slane %v502, 1
      %v556 = vsel %vm553, %v554, %v555
      %v557 = vrot.slane %v429, 1
      %v558 = vrot.slane %v430, 1
      %v559 = vsel %vm553, %v557, %v558
      %v560 = vrot.slane %v431, 1
      %v561 = vrot.slane %v432, 1
      %v562 = vsel %vm553, %v560, %v561
      %v563 = vrot.slane %v433, 1
      %v564 = vrot.slane %v434, 1
      %v565 = vsel %vm553, %v563, %v564
      %v566 = vrot.slane %v435, 1
      %v567 = vrot.slane %v436, 1
      %v568 = vsel %vm553, %v566, %v567
      %v569 = vrot.slane %v504, 1
      %v570 = vrot.slane %v505, 1
      %v571 = vsel %vm553, %v569, %v570
      %v578 = vsel %vm553, %v555, 0.0
      %v579 = vsel %vm553, %v558, 0.0
      %v580 = vsel %vm553, %v561, 0.0
      %v581 = vsel %vm553, %v564, 0.0
      %v582 = vsel %vm553, %v567, 0.0
      %v583 = vsel %vm553, %v570, 0.0
      %584 = vrot.lane.b32.xlu0 %v501, 2
      %v585 = vpop.permute.xlu0 %584
      %586 = vrot.lane.b32.xlu0 %v502, 2
      %v587 = vpop.permute.xlu0 %586
      %588 = vrot.lane.b32.xlu0 %v429, 2
      %v589 = vpop.permute.xlu0 %588
      %590 = vrot.lane.b32.xlu0 %v430, 2
      %v591 = vpop.permute.xlu0 %590
      %592 = vrot.lane.b32.xlu0 %v431, 2
      %v593 = vpop.permute.xlu0 %592
      %594 = vrot.lane.b32.xlu0 %v432, 2
      %v595 = vpop.permute.xlu0 %594
      %596 = vrot.lane.b32.xlu0 %v433, 2
      %v597 = vpop.permute.xlu0 %596
      %598 = vrot.lane.b32.xlu0 %v434, 2
      %v599 = vpop.permute.xlu0 %598
      %612 = vrot.lane.b32.xlu0 %v556, 4
      %v613 = vpop.permute.xlu0 %612
      %614 = vrot.lane.b32.xlu0 %v578, 4
      %v615 = vpop.permute.xlu0 %614
      %616 = vrot.lane.b32.xlu0 %v559, 4
      %v617 = vpop.permute.xlu0 %616
      %618 = vrot.lane.b32.xlu0 %v579, 4
      %v619 = vpop.permute.xlu0 %618
      %620 = vrot.lane.b32.xlu0 %v562, 4
      %v621 = vpop.permute.xlu0 %620
      %622 = vrot.lane.b32.xlu0 %v580, 4
      %v623 = vpop.permute.xlu0 %622
      %624 = vrot.lane.b32.xlu0 %v565, 4
      %v625 = vpop.permute.xlu0 %624
      %626 = vrot.lane.b32.xlu0 %v581, 4
      %v627 = vpop.permute.xlu0 %626
      %640 = vrot.lane.b32.xlu0 %v548, 6
      %v641 = vpop.permute.xlu0 %640
      %642 = vrot.lane.b32.xlu0 %v524, 6
      %v643 = vpop.permute.xlu0 %642
      %644 = vrot.lane.b32.xlu0 %v549, 6
      %v645 = vpop.permute.xlu0 %644
      %646 = vrot.lane.b32.xlu0 %v527, 6
      %v647 = vpop.permute.xlu0 %646
      %648 = vrot.lane.b32.xlu0 %v550, 6
      %v649 = vpop.permute.xlu0 %648
      %650 = vrot.lane.b32.xlu0 %v530, 6
      %v651 = vpop.permute.xlu0 %650
      %652 = vrot.lane.b32.xlu0 %v551, 6
      %v653 = vpop.permute.xlu0 %652
      %654 = vrot.lane.b32.xlu0 %v533, 6
      %v655 = vpop.permute.xlu0 %654
      %664 = vrot.lane.b32.xlu0 %v429, 8
      %v665 = vpop.permute.xlu0 %664
      %666 = vrot.lane.b32.xlu0 %v430, 8
      %v667 = vpop.permute.xlu0 %666
      %668 = vrot.lane.b32.xlu0 %v431, 8
      %v669 = vpop.permute.xlu0 %668
      %670 = vrot.lane.b32.xlu0 %v432, 8
      %v671 = vpop.permute.xlu0 %670
      %672 = vrot.lane.b32.xlu0 %v433, 8
      %v673 = vpop.permute.xlu0 %672
      %674 = vrot.lane.b32.xlu0 %v434, 8
      %v675 = vpop.permute.xlu0 %674
      %676 = vrot.lane.b32.xlu0 %v435, 8
      %v677 = vpop.permute.xlu0 %676
      %678 = vrot.lane.b32.xlu0 %v436, 8
      %v679 = vpop.permute.xlu0 %678
      %689 = vrot.lane.b32.xlu0 %v559, 10
      %v690 = vpop.permute.xlu0 %689
      %691 = vrot.lane.b32.xlu0 %v579, 10
      %v692 = vpop.permute.xlu0 %691
      %693 = vrot.lane.b32.xlu0 %v562, 10
      %v694 = vpop.permute.xlu0 %693
      %695 = vrot.lane.b32.xlu0 %v580, 10
      %v696 = vpop.permute.xlu0 %695
      %697 = vrot.lane.b32.xlu0 %v565, 10
      %v698 = vpop.permute.xlu0 %697
      %699 = vrot.lane.b32.xlu0 %v581, 10
      %v700 = vpop.permute.xlu0 %699
      %701 = vrot.lane.b32.xlu0 %v568, 10
      %v702 = vpop.permute.xlu0 %701
      %703 = vrot.lane.b32.xlu0 %v582, 10
      %v704 = vpop.permute.xlu0 %703
      %714 = vrot.lane.b32.xlu0 %v549, 12
      %v715 = vpop.permute.xlu0 %714
      %716 = vrot.lane.b32.xlu0 %v527, 12
      %v717 = vpop.permute.xlu0 %716
      %718 = vrot.lane.b32.xlu0 %v550, 12
      %v719 = vpop.permute.xlu0 %718
      %720 = vrot.lane.b32.xlu0 %v530, 12
      %v721 = vpop.permute.xlu0 %720
      %722 = vrot.lane.b32.xlu0 %v551, 12
      %v723 = vpop.permute.xlu0 %722
      %724 = vrot.lane.b32.xlu0 %v533, 12
      %v725 = vpop.permute.xlu0 %724
      %726 = vrot.lane.b32.xlu0 %v552, 12
      %v727 = vpop.permute.xlu0 %726
      %728 = vrot.lane.b32.xlu0 %v536, 12
      %v729 = vpop.permute.xlu0 %728
      %738 = vrot.lane.b32.xlu0 %v431, 14
      %v739 = vpop.permute.xlu0 %738
      %740 = vrot.lane.b32.xlu0 %v432, 14
      %v741 = vpop.permute.xlu0 %740
      %742 = vrot.lane.b32.xlu0 %v433, 14
      %v743 = vpop.permute.xlu0 %742
      %744 = vrot.lane.b32.xlu0 %v434, 14
      %v745 = vpop.permute.xlu0 %744
      %746 = vrot.lane.b32.xlu0 %v435, 14
      %v747 = vpop.permute.xlu0 %746
      %748 = vrot.lane.b32.xlu0 %v436, 14
      %v749 = vpop.permute.xlu0 %748
      %750 = vrot.lane.b32.xlu0 %v504, 14
      %v751 = vpop.permute.xlu0 %750
      %752 = vrot.lane.b32.xlu0 %v505, 14
      %v753 = vpop.permute.xlu0 %752
      %763 = vrot.lane.b32.xlu0 %v562, 16
      %v764 = vpop.permute.xlu0 %763
      %765 = vrot.lane.b32.xlu0 %v580, 16
      %v766 = vpop.permute.xlu0 %765
      %767 = vrot.lane.b32.xlu0 %v565, 16
      %v768 = vpop.permute.xlu0 %767
      %769 = vrot.lane.b32.xlu0 %v581, 16
      %v770 = vpop.permute.xlu0 %769
      %771 = vrot.lane.b32.xlu0 %v568, 16
      %v772 = vpop.permute.xlu0 %771
      %773 = vrot.lane.b32.xlu0 %v582, 16
      %v774 = vpop.permute.xlu0 %773
      %775 = vrot.lane.b32.xlu0 %v571, 16
      %v776 = vpop.permute.xlu0 %775
      %777 = vrot.lane.b32.xlu0 %v583, 16
      %v778 = vpop.permute.xlu0 %777
      %vm787 = vcmask 15360
      %v788 = vsel %vm787, %v547, %v585
      %v789 = vsel %vm787, %v521, %v587
      %v790 = vsel %vm787, %v548, %v589
      %v791 = vsel %vm787, %v524, %v591
      %v792 = vsel %vm787, %v549, %v593
      %v793 = vsel %vm787, %v527, %v595
      %v794 = vsel %vm787, %v550, %v597
      %v795 = vsel %vm787, %v530, %v599
      %v796 = vsel %vm343, %v788, %v613
      %v797 = vsel %vm343, %v789, %v615
      %v798 = vsel %vm343, %v790, %v617
      %v799 = vsel %vm343, %v791, %v619
      %v800 = vsel %vm343, %v792, %v621
      %v801 = vsel %vm343, %v793, %v623
      %v802 = vsel %vm343, %v794, %v625
      %v803 = vsel %vm343, %v795, %v627
      %vm804 = vcmask 48128
      %v805 = vsel %vm804, %v796, %v641
      %v806 = vsel %vm804, %v797, %v643
      %v807 = vsel %vm804, %v798, %v645
      %v808 = vsel %vm804, %v799, %v647
      %v809 = vsel %vm804, %v800, %v649
      %v810 = vsel %vm804, %v801, %v651
      %v811 = vsel %vm804, %v802, %v653
      %v812 = vsel %vm804, %v803, %v655
      %vm813 = vcmask 64512
      %v814 = vsel %vm813, %v805, %v665
      %v815 = vsel %vm813, %v806, %v667
      %v816 = vsel %vm813, %v807, %v669
      %v817 = vsel %vm813, %v808, %v671
      %v818 = vsel %vm813, %v809, %v673
      %v819 = vsel %vm813, %v810, %v675
      %v820 = vsel %vm813, %v811, %v677
      %v821 = vsel %vm813, %v812, %v679
      %vm822 = vcmask 80896
      %v823 = vsel %vm822, %v814, %v690
      %v824 = vsel %vm822, %v815, %v692
      %v825 = vsel %vm822, %v816, %v694
      %v826 = vsel %vm822, %v817, %v696
      %v827 = vsel %vm822, %v818, %v698
      %v828 = vsel %vm822, %v819, %v700
      %v829 = vsel %vm822, %v820, %v702
      %v830 = vsel %vm822, %v821, %v704
      %vm831 = vcmask 97280
      %v832 = vsel %vm831, %v823, %v715
      %v833 = vsel %vm831, %v824, %v717
      %v834 = vsel %vm831, %v825, %v719
      %v835 = vsel %vm831, %v826, %v721
      %v836 = vsel %vm831, %v827, %v723
      %v837 = vsel %vm831, %v828, %v725
      %v838 = vsel %vm831, %v829, %v727
      %v839 = vsel %vm831, %v830, %v729
      %vm840 = vcmask 113664
      %v841 = vsel %vm840, %v832, %v739
      %v842 = vsel %vm840, %v833, %v741
      %v843 = vsel %vm840, %v834, %v743
      %v844 = vsel %vm840, %v835, %v745
      %v845 = vsel %vm840, %v836, %v747
      %v846 = vsel %vm840, %v837, %v749
      %v847 = vsel %vm840, %v838, %v751
      %v848 = vsel %vm840, %v839, %v753
      %vm849 = vcmask 130048
      %v850 = vsel %vm849, %v841, %v764
      %v851 = vsel %vm849, %v842, %v766
      %v852 = vsel %vm849, %v843, %v768
      %v853 = vsel %vm849, %v844, %v770
      %v854 = vsel %vm849, %v845, %v772
      %v855 = vsel %vm849, %v846, %v774
      %v856 = vsel %vm849, %v847, %v776
      %v857 = vsel %vm849, %v848, %v778
      %v858 = vld [vmem:[%s4] sm:$0xff]
      %v859 = vld [vmem:[%s4 + $0x8] sm:$0xff]
      %v860 = vld [vmem:[%s4 + $0x10] sm:$0x3]
      %v861 = vld [vmem:[%s5] sm:$0x1]
      %v863 = vperm.slane %v861, 0
      %vm865 = vcmask 146432
      %v867 = vsel %vm865, %v850, 0
      %v870 = vsel %vm865, %v851, 0
      %v873 = vsel %vm865, %v852, 0
      %v876 = vsel %vm865, %v853, 0
      %v879 = vsel %vm865, %v854, 0
      %v882 = vsel %vm865, %v855, 0
      %v885 = vsel %vm865, %v856, 0
      %v888 = vsel %vm865, %v857, 0
      %vm890 = vcmask 1041408
      %v892 = vsel %vm890, %v860, 0
      %894 = vmatpush.msra.mxu0 0.0
      %895 = vmatpush.msra.mxu0 0.0
      %896 = vmatpush.msra.mxu0 0.0
      %897 = vmatpush.msra.mxu0 0.0
      %898 = vmatpush.msra.mxu0 0.0
      %899 = vmatpush.msra.mxu0 0.0
      %900 = vmatpush.msra.mxu0 0.0
      %901 = vmatpush.msra.mxu0 0.0
      %902 = vmatpush.msra.mxu0 0.0
      %903 = vmatpush.msra.mxu0 0.0
      %904 = vmatpush.msra.mxu0 0.0
      %905 = vmatpush.msra.mxu0 0.0
      %906 = vmatpush.msra.mxu0 0.0
      %907 = vmatpush.msra.mxu0 %v892
      %908 = vmatpush.msra.mxu0 %v859
      %909 = vmatpush.msra.mxu0 %v858
      %910 = vmatmul.f32.gmra.mxu0 %v867
      %v911 = vpop.f32.mrf.mxu0
      %v912 = vadd.f32 %v863, %v911
      %913 = vmatmul.f32.gmra.mxu0 %v870
      %v914 = vpop.f32.mrf.mxu0
      %v915 = vadd.f32 %v863, %v914
      %916 = vmatmul.f32.gmra.mxu0 %v873
      %v917 = vpop.f32.mrf.mxu0
      %v918 = vadd.f32 %v863, %v917
      %919 = vmatmul.f32.gmra.mxu0 %v876
      %v920 = vpop.f32.mrf.mxu0
      %v921 = vadd.f32 %v863, %v920
      %922 = vmatmul.f32.gmra.mxu0 %v879
      %v923 = vpop.f32.mrf.mxu0
      %v924 = vadd.f32 %v863, %v923
      %925 = vmatmul.f32.gmra.mxu0 %v882
      %v926 = vpop.f32.mrf.mxu0
      %v927 = vadd.f32 %v863, %v926
      %928 = vmatmul.f32.gmra.mxu0 %v885
      %v929 = vpop.f32.mrf.mxu0
      %v930 = vadd.f32 %v863, %v929
      %931 = vmatmul.f32.gmra.mxu0 %v888
      %v932 = vpop.f32.mrf.mxu0
      %v933 = vadd.f32 %v863, %v932
      %934 = vdwg.mxu0
      %vm935 = vcmp.gt.f32.partialorder %v912, 0.0
      %vm936 = vcmp.gt.f32.partialorder %v915, 0.0
      %vm937 = vcmp.gt.f32.partialorder %v918, 0.0
      %vm938 = vcmp.gt.f32.partialorder %v921, 0.0
      %vm939 = vcmp.gt.f32.partialorder %v924, 0.0
      %vm940 = vcmp.gt.f32.partialorder %v927, 0.0
      %vm941 = vcmp.gt.f32.partialorder %v930, 0.0
      %vm942 = vcmp.gt.f32.partialorder %v933, 0.0
      %v943 = vmul.f32 %v912, 0.1
      %v944 = vmul.f32 %v915, 0.1
      %v945 = vmul.f32 %v918, 0.1
      %v946 = vmul.f32 %v921, 0.1
      %v947 = vmul.f32 %v924, 0.1
      %v948 = vmul.f32 %v927, 0.1
      %v949 = vmul.f32 %v930, 0.1
      %v950 = vmul.f32 %v933, 0.1
      %v951 = vsel %vm935, %v912, %v943
      %v952 = vsel %vm936, %v915, %v944
      %v953 = vsel %vm937, %v918, %v945
      %v954 = vsel %vm938, %v921, %v946
      %v955 = vsel %vm939, %v924, %v947
      %v956 = vsel %vm940, %v927, %v948
      %v957 = vsel %vm941, %v930, %v949
      %v958 = vsel %vm942, %v933, %v950
      %v959 = vadd.f32 %v951, %v330
      %v960 = vadd.f32 %v952, %v331
      %v961 = vadd.f32 %v953, %v332
      %v962 = vadd.f32 %v954, %v333
      %v963 = vadd.f32 %v955, %v334
      %v964 = vadd.f32 %v956, %v335
      %v965 = vadd.f32 %v957, %v336
      %v966 = vadd.f32 %v958, %v337
      %967 = vst.msk [vmem:[%s328] sm:$0xff] %vm343, %v959
      %968 = vst.msk [vmem:[%s328 + $0x8] sm:$0xff] %vm343, %v960
      %969 = vst.msk [vmem:[%s328 + $0x10] sm:$0xff] %vm343, %v961
      %970 = vst.msk [vmem:[%s328 + $0x18] sm:$0xff] %vm343, %v962
      %971 = vst.msk [vmem:[%s328 + $0x20] sm:$0xff] %vm343, %v963
      %972 = vst.msk [vmem:[%s328 + $0x28] sm:$0xff] %vm343, %v964
      %973 = vst.msk [vmem:[%s328 + $0x30] sm:$0xff] %vm343, %v965
      %974 = vst.msk [vmem:[%s328 + $0x38] sm:$0xff] %vm343, %v966
      %s975 = smul.u32 4, %s22
      %p976 = scmp.lt.s32.totalorder %s21, 1
      %s977 = scalar_select %p976, %s21, 1
      %p978 = scmp.lt.s32.totalorder %s975, 15
      %s979 = scalar_select %p978, %s975, 15
      %s980 = smul.addr %s979, 2
      %s981 = smul.addr %s977, 32
      %s982 = sadd.s32 %s980, %s981
      %s983 = smul.addr %s982, 8
      %s984 = scalar_lea.vmem %s6, %s983
      // Predicated region
      $region45: #{tpu_custom_call.1} parent=43 // pred_check
        %p985 = pneg %p189
      $region46: #{tpu_custom_call.1} parent=43 // pred_check_branch
        %987 = sbr.rel (%p985) target = $region48
      $region47: #{tpu_custom_call.1} parent=43 // pred_region
        %s988 = smul.u32 4, %s22
      $region48: #{tpu_custom_call.1} parent=43 // pred_fallthru
        _
    $region44: #{tpu_custom_call.1} parent=5 // pred_fallthru
      _
    %p989 = scmp.le.s32.totalorder 2, %s12
    // Predicated region
    $region49: #{tpu_custom_call.1} parent=5 // pred_check
      %p990 = pneg %p989
    $region50: #{tpu_custom_call.1} parent=5 // pred_check_branch
      %992 = sbr.rel (%p990) target = $region52
    $region51: #{tpu_custom_call.1} parent=5 // pred_region
      %s993 = ssub.s32 %s12, 2
      // Predicated region
      $region53: #{tpu_custom_call.1} parent=51 // pred_check
        %p994 = pneg %p195
      $region54: #{tpu_custom_call.1} parent=51 // pred_check_branch
        %996 = sbr.rel (%p994) target = $region56
      $region55: #{tpu_custom_call.1} parent=51 // pred_region
        %s997 = smul.u32 4, %s24
        %p998 = scmp.lt.s32.totalorder %s23, 1
        %s999 = scalar_select %p998, %s23, 1
        %p1000 = scmp.lt.s32.totalorder %s997, 15
        %s1001 = scalar_select %p1000, %s997, 15
        %s1002 = smul.addr %s1001, 2
        %s1003 = smul.addr %s999, 32
        %s1004 = sadd.s32 %s1002, %s1003
        %s1005 = smul.addr %s1004, 8
        %s1006 = scalar_lea.vmem %s6, %s1005
      $region56: #{tpu_custom_call.1} parent=51 // pred_fallthru
        _
    $region52: #{tpu_custom_call.1} parent=5 // pred_fallthru
      _
  $region6: #{tpu_custom_call.1} parent=0 // loop_footer
    %s16 = sadd.s32 1, %s12
  $region7: #{tpu_custom_call.1} parent=0 // loop_footer_branch
    %11 = sbr.rel target = $region3
  $region8: #{tpu_custom_call.1} parent=0 // loop_exit
    _

// kernel: tpu_custom_call.1
$region0: #{tpu_custom_call.1}
  #allocation0 [shape = 'u32[]', space=smem, size = 0x4, offset = 0x4, fixed_abs, tag = 'smem constant byte address 0x4 - core index']
  #allocation1 [shape = 'u32[72,128]{1,0:T(1,128)}', space=vmem, size = 0x9000, scoped, tag = 'internal scratch']
  %s0 = inlined_call_operand.vmem [shape: f32[2,16,16,4], index: 0, kind: input, shape index: {}]
  %s1 = inlined_call_operand.vmem [shape: f32[2,4,32,4], index: 1, kind: input, shape index: {}]
  %s2 = inlined_call_operand.vmem [shape: f32[4,2], index: 2, kind: input, shape index: {}]
  %s3 = inlined_call_operand.vmem [shape: f32[1,2], index: 3, kind: input, shape index: {}]
  %s4 = inlined_call_operand.vmem [shape: f32[18,4], index: 4, kind: input, shape index: {}]
  %s5 = inlined_call_operand.vmem [shape: f32[1,4], index: 5, kind: input, shape index: {}]
  %s6 = inlined_call_operand.vmem [shape: f32[2,16,16,4], index: 6, kind: output, shape index: {}]
  %s7 = sld [smem:[#allocation0]]
  $region57: #{tpu_custom_call.1} parent=0
    _
  %s9 = ssub.s32 1, %s7
  %s10 = scalar_select 0, %s9, %s7
  loop: start=0, step=1, limit=10
  $region2: #{tpu_custom_call.1} parent=0 // loop_pre_header
    _
  $region3: #{tpu_custom_call.1} parent=0 // loop_header
    %s12 = sphi 0, %s16
    %p13 = scmp.ge.s32.totalorder %s12, 10
    %s19 = sphi 0, %s31
    %s20 = sphi 0, %s27
    %s21 = sphi 0, %s19
    %s22 = sphi 0, %s20
    %s23 = sphi 0, %s21
    %s24 = sphi 0, %s22
    %s36 = sphi 0, %s38
    %s39 = sphi 0, %s36
    %s40 = sphi 0, %s39
    %s56 = sphi 0, %s40
    %s64 = sphi 0, %s66
    %s67 = sphi 0, %s64
    %s68 = sphi 0, %s67
    %s84 = sphi 0, %s68
    %s88 = sphi 0, %s88
    %s90 = sphi 0, %s88
    %s91 = sphi 0, %s90
    %s105 = sphi 0, %s91
    %s109 = sphi 0, %s109
    %s111 = sphi 0, %s109
    %s112 = sphi 0, %s111
    %s126 = sphi 0, %s112
    %s130 = sphi 0, %s130
    %s132 = sphi 0, %s130
    %s133 = sphi 0, %s132
    %s147 = sphi 0, %s133
    %s151 = sphi 0, %s151
    %s153 = sphi 0, %s151
    %s154 = sphi 0, %s153
    %s168 = sphi 0, %s154
    %s176 = sphi 0, %s178
    %s179 = sphi 0, %s176
    %s180 = sphi 0, %s179
    %s196 = sphi 0, %s180
  $region4: #{tpu_custom_call.1} parent=0 // loop_header_branch
    %15 = sbr.rel (%p13) target = $region8
  $region5: #{tpu_custom_call.1} parent=0 // loop_body
    %s17 = ssub.s32 %s12, 1
    %s18 = ssub.s32 %s12, 2
    %s25 = sadd.s32 1, %s20
    %p26 = scmp.ge.s32.totalorder %s25, 4
    %s27 = scalar_select %p26, 0, %s25
    %s28 = sadd.s32 1, %s19
    %s29 = scalar_select %p26, %s28, %s19
    %p30 = scmp.ge.s32.totalorder %s29, 2
    %s31 = scalar_select %p30, 0, %s29
    %s32 = ssub.s32 %s19, %s31
    %s33 = ssub.s32 %s20, %s27
    %s34 = sor.u32 %s32, %s33
    %p35 = scmp.eq.s32.totalorder %s34, 0
    %s37 = sadd.s32 %s36, 1
    %s38 = scalar_select %p35, %s36, %s37
    %p41 = pneg %p35
    %p42 = scmp.eq.s32.totalorder %s12, 7
    %p43 = por %p41, %p42
    %p44 = scmp.ne.s32.totalorder %s36, %s39
    %p45 = scmp.eq.s32.totalorder %s12, 0
    %p46 = por %p44, %p45
    %p47 = scmp.ne.s32.totalorder %s36, %s39
    %p48 = scmp.eq.s32.totalorder %s17, 7
    %p49 = por %p47, %p48
    %p50 = scmp.ne.s32.totalorder %s39, %s40
    %p51 = scmp.eq.s32.totalorder %s17, 0
    %p52 = por %p50, %p51
    %p53 = scmp.ne.s32.totalorder %s39, %s40
    %p54 = scmp.eq.s32.totalorder %s18, 7
    %p55 = por %p53, %p54
    %p57 = scmp.ne.s32.totalorder %s40, %s56
    %p58 = scmp.eq.s32.totalorder %s18, 0
    %p59 = por %p57, %p58
    %s60 = ssub.s32 %s19, %s31
    %s61 = ssub.s32 %s20, %s27
    %s62 = sor.u32 %s60, %s61
    %p63 = scmp.eq.s32.totalorder %s62, 0
    %s65 = sadd.s32 %s64, 1
    %s66 = scalar_select %p63, %s64, %s65
    %p69 = pneg %p63
    %p70 = scmp.eq.s32.totalorder %s12, 7
    %p71 = por %p69, %p70
    %p72 = scmp.ne.s32.totalorder %s64, %s67
    %p73 = scmp.eq.s32.totalorder %s12, 0
    %p74 = por %p72, %p73
    %p75 = scmp.ne.s32.totalorder %s64, %s67
    %p76 = scmp.eq.s32.totalorder %s17, 7
    %p77 = por %p75, %p76
    %p78 = scmp.ne.s32.totalorder %s67, %s68
    %p79 = scmp.eq.s32.totalorder %s17, 0
    %p80 = por %p78, %p79
    %p81 = scmp.ne.s32.totalorder %s67, %s68
    %p82 = scmp.eq.s32.totalorder %s18, 7
    %p83 = por %p81, %p82
    %p85 = scmp.ne.s32.totalorder %s68, %s84
    %p86 = scmp.eq.s32.totalorder %s18, 0
    %p87 = por %p85, %p86
    %s89 = sadd.s32 %s88, 1
    %p92 = scmp.eq.s32.totalorder %s12, 7
    %p93 = scmp.ne.s32.totalorder %s88, %s90
    %p94 = scmp.eq.s32.totalorder %s12, 0
    %p95 = por %p93, %p94
    %p96 = scmp.ne.s32.totalorder %s88, %s90
    %p97 = scmp.eq.s32.totalorder %s17, 7
    %p98 = por %p96, %p97
    %p99 = scmp.ne.s32.totalorder %s90, %s91
    %p100 = scmp.eq.s32.totalorder %s17, 0
    %p101 = por %p99, %p100
    %p102 = scmp.ne.s32.totalorder %s90, %s91
    %p103 = scmp.eq.s32.totalorder %s18, 7
    %p104 = por %p102, %p103
    %p106 = scmp.ne.s32.totalorder %s91, %s105
    %p107 = scmp.eq.s32.totalorder %s18, 0
    %p108 = por %p106, %p107
    %s110 = sadd.s32 %s109, 1
    %p113 = scmp.eq.s32.totalorder %s12, 7
    %p114 = scmp.ne.s32.totalorder %s109, %s111
    %p115 = scmp.eq.s32.totalorder %s12, 0
    %p116 = por %p114, %p115
    %p117 = scmp.ne.s32.totalorder %s109, %s111
    %p118 = scmp.eq.s32.totalorder %s17, 7
    %p119 = por %p117, %p118
    %p120 = scmp.ne.s32.totalorder %s111, %s112
    %p121 = scmp.eq.s32.totalorder %s17, 0
    %p122 = por %p120, %p121
    %p123 = scmp.ne.s32.totalorder %s111, %s112
    %p124 = scmp.eq.s32.totalorder %s18, 7
    %p125 = por %p123, %p124
    %p127 = scmp.ne.s32.totalorder %s112, %s126
    %p128 = scmp.eq.s32.totalorder %s18, 0
    %p129 = por %p127, %p128
    %s131 = sadd.s32 %s130, 1
    %p134 = scmp.eq.s32.totalorder %s12, 7
    %p135 = scmp.ne.s32.totalorder %s130, %s132
    %p136 = scmp.eq.s32.totalorder %s12, 0
    %p137 = por %p135, %p136
    %p138 = scmp.ne.s32.totalorder %s130, %s132
    %p139 = scmp.eq.s32.totalorder %s17, 7
    %p140 = por %p138, %p139
    %p141 = scmp.ne.s32.totalorder %s132, %s133
    %p142 = scmp.eq.s32.totalorder %s17, 0
    %p143 = por %p141, %p142
    %p144 = scmp.ne.s32.totalorder %s132, %s133
    %p145 = scmp.eq.s32.totalorder %s18, 7
    %p146 = por %p144, %p145
    %p148 = scmp.ne.s32.totalorder %s133, %s147
    %p149 = scmp.eq.s32.totalorder %s18, 0
    %p150 = por %p148, %p149
    %s152 = sadd.s32 %s151, 1
    %p155 = scmp.eq.s32.totalorder %s12, 7
    %p156 = scmp.ne.s32.totalorder %s151, %s153
    %p157 = scmp.eq.s32.totalorder %s12, 0
    %p158 = por %p156, %p157
    %p159 = scmp.ne.s32.totalorder %s151, %s153
    %p160 = scmp.eq.s32.totalorder %s17, 7
    %p161 = por %p159, %p160
    %p162 = scmp.ne.s32.totalorder %s153, %s154
    %p163 = scmp.eq.s32.totalorder %s17, 0
    %p164 = por %p162, %p163
    %p165 = scmp.ne.s32.totalorder %s153, %s154
    %p166 = scmp.eq.s32.totalorder %s18, 7
    %p167 = por %p165, %p166
    %p169 = scmp.ne.s32.totalorder %s154, %s168
    %p170 = scmp.eq.s32.totalorder %s18, 0
    %p171 = por %p169, %p170
    %s172 = ssub.s32 %s19, %s31
    %s173 = ssub.s32 %s20, %s27
    %s174 = sor.u32 %s172, %s173
    %p175 = scmp.eq.s32.totalorder %s174, 0
    %s177 = sadd.s32 %s176, 1
    %s178 = scalar_select %p175, %s176, %s177
    %p181 = pneg %p175
    %p182 = scmp.eq.s32.totalorder %s12, 7
    %p183 = por %p181, %p182
    %p184 = scmp.ne.s32.totalorder %s176, %s179
    %p185 = scmp.eq.s32.totalorder %s12, 0
    %p186 = por %p184, %p185
    %p187 = scmp.ne.s32.totalorder %s176, %s179
    %p188 = scmp.eq.s32.totalorder %s17, 7
    %p189 = por %p187, %p188
    %p190 = scmp.ne.s32.totalorder %s179, %s180
    %p191 = scmp.eq.s32.totalorder %s17, 0
    %p192 = por %p190, %p191
    %p193 = scmp.ne.s32.totalorder %s179, %s180
    %p194 = scmp.eq.s32.totalorder %s18, 7
    %p195 = por %p193, %p194
    %p197 = scmp.ne.s32.totalorder %s180, %s196
    %p198 = scmp.eq.s32.totalorder %s18, 0
    %p199 = por %p197, %p198
    %p200 = scmp.le.s32.totalorder 1, %s12
    %p201 = scmp.lt.s32.totalorder %s12, 9
    %p202 = pnand %p200, %p201
    %p203 = pneg %p202
    // Predicated region
    $region9: #{tpu_custom_call.1} parent=5 // pred_check
      _
    $region10: #{tpu_custom_call.1} parent=5 // pred_check_branch
      %205 = sbr.rel (%p202) target = $region12
    $region11: #{tpu_custom_call.1} parent=5 // pred_region
      %s206 = ssub.s32 %s12, 1
      // Predicated region
      $region13: #{tpu_custom_call.1} parent=11 // pred_check
        %p207 = pneg %p101
      $region14: #{tpu_custom_call.1} parent=11 // pred_check_branch
        %209 = sbr.rel (%p207) target = $region16
      $region15: #{tpu_custom_call.1} parent=11 // pred_region
        _
      $region16: #{tpu_custom_call.1} parent=11 // pred_fallthru
        _
      // Predicated region
      $region17: #{tpu_custom_call.1} parent=11 // pred_check
        %p210 = pneg %p122
      $region18: #{tpu_custom_call.1} parent=11 // pred_check_branch
        %212 = sbr.rel (%p210) target = $region20
      $region19: #{tpu_custom_call.1} parent=11 // pred_region
        _
      $region20: #{tpu_custom_call.1} parent=11 // pred_fallthru
        _
      // Predicated region
      $region21: #{tpu_custom_call.1} parent=11 // pred_check
        %p213 = pneg %p143
      $region22: #{tpu_custom_call.1} parent=11 // pred_check_branch
        %215 = sbr.rel (%p213) target = $region24
      $region23: #{tpu_custom_call.1} parent=11 // pred_region
        _
      $region24: #{tpu_custom_call.1} parent=11 // pred_fallthru
        _
      // Predicated region
      $region25: #{tpu_custom_call.1} parent=11 // pred_check
        %p216 = pneg %p164
      $region26: #{tpu_custom_call.1} parent=11 // pred_check_branch
        %218 = sbr.rel (%p216) target = $region28
      $region27: #{tpu_custom_call.1} parent=11 // pred_region
        _
      $region28: #{tpu_custom_call.1} parent=11 // pred_fallthru
        _
    $region12: #{tpu_custom_call.1} parent=5 // pred_fallthru
      _
    %p219 = scmp.lt.s32.totalorder %s12, 8
    // Predicated region
    $region29: #{tpu_custom_call.1} parent=5 // pred_check
      %p220 = pneg %p219
    $region30: #{tpu_custom_call.1} parent=5 // pred_check_branch
      %222 = sbr.rel (%p220) target = $region32
    $region31: #{tpu_custom_call.1} parent=5 // pred_region
      // Predicated region
      $region33: #{tpu_custom_call.1} parent=31 // pred_check
        %p223 = pneg %p46
      $region34: #{tpu_custom_call.1} parent=31 // pred_check_branch
        %225 = sbr.rel (%p223) target = $region36
      $region35: #{tpu_custom_call.1} parent=31 // pred_region
        %s226 = smul.u32 4, %s20
        %p227 = scmp.lt.s32.totalorder %s19, 1
        %s228 = scalar_select %p227, %s19, 1
        %p229 = scmp.lt.s32.totalorder %s226, 15
        %s230 = scalar_select %p229, %s226, 15
        %s231 = smul.addr %s230, 2
        %s232 = smul.addr %s228, 32
        %s233 = sadd.s32 %s231, %s232
        %s234 = smul.addr %s233, 8
        %s235 = scalar_lea.vmem %s0, %s234
        %s236 = smul.u32 4, %s20
      $region36: #{tpu_custom_call.1} parent=31 // pred_fallthru
        _
      // Predicated region
      $region37: #{tpu_custom_call.1} parent=31 // pred_check
        %p237 = pneg %p74
      $region38: #{tpu_custom_call.1} parent=31 // pred_check_branch
        %239 = sbr.rel (%p237) target = $region40
      $region39: #{tpu_custom_call.1} parent=31 // pred_region
        %p240 = scmp.lt.s32.totalorder %s19, 1
        %s241 = scalar_select %p240, %s19, 1
        %p242 = scmp.lt.s32.totalorder %s20, 3
        %s243 = scalar_select %p242, %s20, 3
        %s244 = smul.addr %s243, 4
        %s245 = smul.addr %s241, 16
        %s246 = sadd.s32 %s244, %s245
        %s247 = smul.addr %s246, 8
        %s248 = scalar_lea.vmem %s1, %s247
      $region40: #{tpu_custom_call.1} parent=31 // pred_fallthru
        _
    $region32: #{tpu_custom_call.1} parent=5 // pred_fallthru
      _
    %p249 = scmp.le.s32.totalorder 1, %s12
    %p250 = scmp.lt.s32.totalorder %s12, 9
    %p251 = pnand %p249, %p250
    %p252 = pneg %p251
    // Predicated region
    $region41: #{tpu_custom_call.1} parent=5 // pred_check
      _
    $region42: #{tpu_custom_call.1} parent=5 // pred_check_branch
      %254 = sbr.rel (%p251) target = $region44
    $region43: #{tpu_custom_call.1} parent=5 // pred_region
      %s255 = ssub.s32 %s12, 1
      %s256 = smul.u32 4, %s22
      %p257 = scmp.lt.s32.totalorder %s21, 1
      %s258 = scalar_select %p257, %s21, 1
      %p259 = scmp.lt.s32.totalorder %s256, 15
      %s260 = scalar_select %p259, %s256, 15
      %s261 = smul.addr %s260, 2
      %s262 = smul.addr %s258, 32
      %s263 = sadd.s32 %s261, %s262
      %s264 = smul.addr %s263, 8
      %s265 = scalar_lea.vmem %s0, %s264
      %p266 = pneg %p52
      %p267 = pneg %p49
      %p268 = scmp.lt.s32.totalorder %s21, 1
      %s269 = scalar_select %p268, %s21, 1
      %p270 = scmp.lt.s32.totalorder %s22, 3
      %s271 = scalar_select %p270, %s22, 3
      %s272 = smul.addr %s271, 4
      %s273 = smul.addr %s269, 16
      %s274 = sadd.s32 %s272, %s273
      %s275 = smul.addr %s274, 8
      %s276 = scalar_lea.vmem %s1, %s275
      %p277 = pneg %p80
      %p278 = pneg %p77
      %p279 = pneg %p101
      %p280 = pneg %p98
      %p281 = pneg %p122
      %p282 = pneg %p119
      %p283 = pneg %p143
      %p284 = pneg %p140
      %p285 = pneg %p164
      %p286 = pneg %p161
      %p287 = pneg %p192
      %p288 = pneg %p189
      %s289 = smul.u32 4, %s22
      %p290 = scmp.lt.s32.totalorder %s21, 1
      %s291 = scalar_select %p290, %s21, 1
      %p292 = scmp.lt.s32.totalorder %s289, 15
      %s293 = scalar_select %p292, %s289, 15
      %s294 = smul.addr %s293, 2
      %s295 = smul.addr %s291, 32
      %s296 = sadd.s32 %s294, %s295
      %s297 = smul.addr %s296, 8
      %s298 = scalar_lea.vmem %s6, %s297
      %s299 = smul.u32 4, %s22
      %p300 = scmp.lt.s32.totalorder %s21, 1
      %s301 = scalar_select %p300, %s21, 1
      %p302 = scmp.lt.s32.totalorder %s299, 15
      %s303 = scalar_select %p302, %s299, 15
      %s304 = smul.addr %s303, 2
      %s305 = smul.addr %s301, 32
      %s306 = sadd.s32 %s304, %s305
      %s307 = smul.addr %s306, 8
      %s308 = scalar_lea.vmem %s0, %s307
      %s309 = smul.u32 4, %s22
      %p310 = scmp.lt.s32.totalorder %s21, 1
      %s311 = scalar_select %p310, %s21, 1
      %p312 = scmp.lt.s32.totalorder %s22, 3
      %s313 = scalar_select %p312, %s22, 3
      %s314 = smul.addr %s313, 4
      %s315 = smul.addr %s311, 16
      %s316 = sadd.s32 %s314, %s315
      %s317 = smul.addr %s316, 8
      %s318 = scalar_lea.vmem %s1, %s317
      %s319 = smul.u32 4, %s22
      %p320 = scmp.lt.s32.totalorder %s21, 1
      %s321 = scalar_select %p320, %s21, 1
      %p322 = scmp.lt.s32.totalorder %s319, 15
      %s323 = scalar_select %p322, %s319, 15
      %s324 = smul.addr %s323, 2
      %s325 = smul.addr %s321, 32
      %s326 = sadd.s32 %s324, %s325
      %s327 = smul.addr %s326, 8
      %s328 = scalar_lea.vmem %s6, %s327
      %s329 = smul.u32 4, %s22
      %v330 = vld [vmem:[%s308] sm:$0xff]
      %v331 = vld [vmem:[%s308 + $0x8] sm:$0xff]
      %v332 = vld [vmem:[%s308 + $0x10] sm:$0xff]
      %v333 = vld [vmem:[%s308 + $0x18] sm:$0xff]
      %v334 = vld [vmem:[%s308 + $0x20] sm:$0xff]
      %v335 = vld [vmem:[%s308 + $0x28] sm:$0xff]
      %v336 = vld [vmem:[%s308 + $0x30] sm:$0xff]
      %v337 = vld [vmem:[%s308 + $0x38] sm:$0xff]
      %v338 = vld [vmem:[%s2] sm:$0xf]
      %v339 = vld [vmem:[%s3] sm:$0x1]
      %v341 = vperm.slane %v339, 0
      %vm343 = vcmask 31744
      %v345 = vsel %vm343, %v330, 0
      %v348 = vsel %vm343, %v331, 0
      %v351 = vsel %vm343, %v332, 0
      %v354 = vsel %vm343, %v333, 0
      %v357 = vsel %vm343, %v334, 0
      %v360 = vsel %vm343, %v335, 0
      %v363 = vsel %vm343, %v336, 0
      %v366 = vsel %vm343, %v337, 0
      %vm368 = vcmask 1043456
      %v370 = vsel %vm368, %v338, 0
      %372 = vmatpush.msra.mxu0 0.0
      %373 = vmatpush.msra.mxu0 0.0
      %374 = vmatpush.msra.mxu0 0.0
      %375 = vmatpush.msra.mxu0 0.0
      %376 = vmatpush.msra.mxu0 0.0
      %377 = vmatpush.msra.mxu0 0.0
      %378 = vmatpush.msra.mxu0 0.0
      %379 = vmatpush.msra.mxu0 0.0
      %380 = vmatpush.msra.mxu0 0.0
      %381 = vmatpush.msra.mxu0 0.0
      %382 = vmatpush.msra.mxu0 0.0
      %383 = vmatpush.msra.mxu0 0.0
      %384 = vmatpush.msra.mxu0 0.0
      %385 = vmatpush.msra.mxu0 0.0
      %386 = vmatpush.msra.mxu0 0.0
      %387 = vmatpush.msra.mxu0 %v370
      %388 = vmatmul.f32.gmra.mxu0 %v345
      %v389 = vpop.f32.mrf.mxu0
      %v390 = vadd.f32 %v341, %v389
      %391 = vmatmul.f32.gmra.mxu0 %v348
      %v392 = vpop.f32.mrf.mxu0
      %v393 = vadd.f32 %v341, %v392
      %394 = vmatmul.f32.gmra.mxu0 %v351
      %v395 = vpop.f32.mrf.mxu0
      %v396 = vadd.f32 %v341, %v395
      %397 = vmatmul.f32.gmra.mxu0 %v354
      %v398 = vpop.f32.mrf.mxu0
      %v399 = vadd.f32 %v341, %v398
      %400 = vmatmul.f32.gmra.mxu0 %v357
      %v401 = vpop.f32.mrf.mxu0
      %v402 = vadd.f32 %v341, %v401
      %403 = vmatmul.f32.gmra.mxu0 %v360
      %v404 = vpop.f32.mrf.mxu0
      %v405 = vadd.f32 %v341, %v404
      %406 = vmatmul.f32.gmra.mxu0 %v363
      %v407 = vpop.f32.mrf.mxu0
      %v408 = vadd.f32 %v341, %v407
      %409 = vmatmul.f32.gmra.mxu0 %v366
      %v410 = vpop.f32.mrf.mxu0
      %v411 = vadd.f32 %v341, %v410
      %412 = vdwg.mxu0
      %vm413 = vcmp.gt.f32.partialorder %v390, 0.0
      %vm414 = vcmp.gt.f32.partialorder %v393, 0.0
      %vm415 = vcmp.gt.f32.partialorder %v396, 0.0
      %vm416 = vcmp.gt.f32.partialorder %v399, 0.0
      %vm417 = vcmp.gt.f32.partialorder %v402, 0.0
      %vm418 = vcmp.gt.f32.partialorder %v405, 0.0
      %vm419 = vcmp.gt.f32.partialorder %v408, 0.0
      %vm420 = vcmp.gt.f32.partialorder %v411, 0.0
      %v421 = vmul.f32 %v390, 0.1
      %v422 = vmul.f32 %v393, 0.1
      %v423 = vmul.f32 %v396, 0.1
      %v424 = vmul.f32 %v399, 0.1
      %v425 = vmul.f32 %v402, 0.1
      %v426 = vmul.f32 %v405, 0.1
      %v427 = vmul.f32 %v408, 0.1
      %v428 = vmul.f32 %v411, 0.1
      %v429 = vsel %vm413, %v390, %v421
      %v430 = vsel %vm414, %v393, %v422
      %v431 = vsel %vm415, %v396, %v423
      %v432 = vsel %vm416, %v399, %v424
      %v433 = vsel %vm417, %v402, %v425
      %v434 = vsel %vm418, %v405, %v426
      %v435 = vsel %vm419, %v408, %v427
      %v436 = vsel %vm420, %v411, %v428
      %v437 = vld [vmem:[%s318] sm:$0xff]
      %v438 = vld [vmem:[%s318 + $0x8] sm:$0xff]
      %v439 = vld [vmem:[%s318 + $0x10] sm:$0xff]
      %v440 = vld [vmem:[%s318 + $0x18] sm:$0xff]
      %v442 = vsel %vm343, %v437, 0
      %v445 = vsel %vm343, %v438, 0
      %v448 = vsel %vm343, %v439, 0
      %v451 = vsel %vm343, %v440, 0
      %453 = vmatpush.msra.mxu0 0.0
      %454 = vmatpush.msra.mxu0 0.0
      %455 = vmatpush.msra.mxu0 0.0
      %456 = vmatpush.msra.mxu0 0.0
      %457 = vmatpush.msra.mxu0 0.0
      %458 = vmatpush.msra.mxu0 0.0
      %459 = vmatpush.msra.mxu0 0.0
      %460 = vmatpush.msra.mxu0 0.0
      %461 = vmatpush.msra.mxu0 0.0
      %462 = vmatpush.msra.mxu0 0.0
      %463 = vmatpush.msra.mxu0 0.0
      %464 = vmatpush.msra.mxu0 0.0
      %465 = vmatpush.msra.mxu0 0.0
      %466 = vmatpush.msra.mxu0 0.0
      %467 = vmatpush.msra.mxu0 0.0
      %468 = vmatpush.msra.mxu0 %v370
      %469 = vmatmul.f32.gmra.mxu0 %v442
      %v470 = vpop.f32.mrf.mxu0
      %v471 = vadd.f32 %v341, %v470
      %472 = vmatmul.f32.gmra.mxu0 %v445
      %v473 = vpop.f32.mrf.mxu0
      %v474 = vadd.f32 %v341, %v473
      %475 = vmatmul.f32.gmra.mxu0 %v448
      %v476 = vpop.f32.mrf.mxu0
      %v477 = vadd.f32 %v341, %v476
      %478 = vmatmul.f32.gmra.mxu0 %v451
      %v479 = vpop.f32.mrf.mxu0
      %v480 = vadd.f32 %v341, %v479
      %481 = vdwg.mxu0
      %vm482 = vcmp.gt.f32.partialorder %v471, 0.0
      %vm483 = vcmp.gt.f32.partialorder %v474, 0.0
      %vm484 = vcmp.gt.f32.partialorder %v477, 0.0
      %vm485 = vcmp.gt.f32.partialorder %v480, 0.0
      %v486 = vmul.f32 %v471, 0.1
      %v487 = vmul.f32 %v474, 0.1
      %v488 = vmul.f32 %v477, 0.1
      %v489 = vmul.f32 %v480, 0.1
      %v490 = vsel %vm482, %v471, %v486
      %v491 = vsel %vm483, %v474, %v487
      %v492 = vsel %vm484, %v477, %v488
      %v493 = vsel %vm485, %v480, %v489
      %p494 = scmp.gt.s32.totalorder %s22, 0
      %s495 = scalar_select %p494, 1, 0
      %s496 = scvt.s32.f32 %s495
      %p497 = scmp.lt.s32.totalorder %s22, 3
      %s498 = scalar_select %p497, 1, 0
      %s499 = scvt.s32.f32 %s498
      %v500 = vstv %s496
      %v501 = vmul.f32 %v490, %v500
      %v502 = vmul.f32 %v491, %v500
      %v503 = vstv %s499
      %v504 = vmul.f32 %v492, %v503
      %v505 = vmul.f32 %v493, %v503
      %vm518 = vcmask 1040384
      %v519 = vrot.slane %v501, 7
      %v520 = vrot.slane %v502, 7
      %v521 = vsel %vm518, %v519, %v520
      %v522 = vrot.slane %v429, 7
      %v523 = vrot.slane %v430, 7
      %v524 = vsel %vm518, %v522, %v523
      %v525 = vrot.slane %v431, 7
      %v526 = vrot.slane %v432, 7
      %v527 = vsel %vm518, %v525, %v526
      %v528 = vrot.slane %v433, 7
      %v529 = vrot.slane %v434, 7
      %v530 = vsel %vm518, %v528, %v529
      %v531 = vrot.slane %v435, 7
      %v532 = vrot.slane %v436, 7
      %v533 = vsel %vm518, %v531, %v532
      %v534 = vrot.slane %v504, 7
      %v535 = vrot.slane %v505, 7
      %v536 = vsel %vm518, %v534, %v535
      %v547 = vsel %vm518, 0.0, %v519
      %v548 = vsel %vm518, 0.0, %v522
      %v549 = vsel %vm518, 0.0, %v525
      %v550 = vsel %vm518, 0.0, %v528
      %v551 = vsel %vm518, 0.0, %v531
      %v552 = vsel %vm518, 0.0, %v534
      %vm553 = vcmask 1046528
      %v554 = vrot.slane %v501, 1
      %v555 = vrot.slane %v502, 1
      %v556 = vsel %vm553, %v554, %v555
      %v557 = vrot.slane %v429, 1
      %v558 = vrot.slane %v430, 1
      %v559 = vsel %vm553, %v557, %v558
      %v560 = vrot.slane %v431, 1
      %v561 = vrot.slane %v432, 1
      %v562 = vsel %vm553, %v560, %v561
      %v563 = vrot.slane %v433, 1
      %v564 = vrot.slane %v434, 1
      %v565 = vsel %vm553, %v563, %v564
      %v566 = vrot.slane %v435, 1
      %v567 = vrot.slane %v436, 1
      %v568 = vsel %vm553, %v566, %v567
      %v569 = vrot.slane %v504, 1
      %v570 = vrot.slane %v505, 1
      %v571 = vsel %vm553, %v569, %v570
      %v578 = vsel %vm553, %v555, 0.0
      %v579 = vsel %vm553, %v558, 0.0
      %v580 = vsel %vm553, %v561, 0.0
      %v581 = vsel %vm553, %v564, 0.0
      %v582 = vsel %vm553, %v567, 0.0
      %v583 = vsel %vm553, %v570, 0.0
      %584 = vrot.lane.b32.xlu0 %v501, 2
      %v585 = vpop.permute.xlu0 %584
      %586 = vrot.lane.b32.xlu0 %v502, 2
      %v587 = vpop.permute.xlu0 %586
      %588 = vrot.lane.b32.xlu0 %v429, 2
      %v589 = vpop.permute.xlu0 %588
      %590 = vrot.lane.b32.xlu0 %v430, 2
      %v591 = vpop.permute.xlu0 %590
      %592 = vrot.lane.b32.xlu0 %v431, 2
      %v593 = vpop.permute.xlu0 %592
      %594 = vrot.lane.b32.xlu0 %v432, 2
      %v595 = vpop.permute.xlu0 %594
      %596 = vrot.lane.b32.xlu0 %v433, 2
      %v597 = vpop.permute.xlu0 %596
      %598 = vrot.lane.b32.xlu0 %v434, 2
      %v599 = vpop.permute.xlu0 %598
      %612 = vrot.lane.b32.xlu0 %v556, 4
      %v613 = vpop.permute.xlu0 %612
      %614 = vrot.lane.b32.xlu0 %v578, 4
      %v615 = vpop.permute.xlu0 %614
      %616 = vrot.lane.b32.xlu0 %v559, 4
      %v617 = vpop.permute.xlu0 %616
      %618 = vrot.lane.b32.xlu0 %v579, 4
      %v619 = vpop.permute.xlu0 %618
      %620 = vrot.lane.b32.xlu0 %v562, 4
      %v621 = vpop.permute.xlu0 %620
      %622 = vrot.lane.b32.xlu0 %v580, 4
      %v623 = vpop.permute.xlu0 %622
      %624 = vrot.lane.b32.xlu0 %v565, 4
      %v625 = vpop.permute.xlu0 %624
      %626 = vrot.lane.b32.xlu0 %v581, 4
      %v627 = vpop.permute.xlu0 %626
      %640 = vrot.lane.b32.xlu0 %v548, 6
      %v641 = vpop.permute.xlu0 %640
      %642 = vrot.lane.b32.xlu0 %v524, 6
      %v643 = vpop.permute.xlu0 %642
      %644 = vrot.lane.b32.xlu0 %v549, 6
      %v645 = vpop.permute.xlu0 %644
      %646 = vrot.lane.b32.xlu0 %v527, 6
      %v647 = vpop.permute.xlu0 %646
      %648 = vrot.lane.b32.xlu0 %v550, 6
      %v649 = vpop.permute.xlu0 %648
      %650 = vrot.lane.b32.xlu0 %v530, 6
      %v651 = vpop.permute.xlu0 %650
      %652 = vrot.lane.b32.xlu0 %v551, 6
      %v653 = vpop.permute.xlu0 %652
      %654 = vrot.lane.b32.xlu0 %v533, 6
      %v655 = vpop.permute.xlu0 %654
      %664 = vrot.lane.b32.xlu0 %v429, 8
      %v665 = vpop.permute.xlu0 %664
      %666 = vrot.lane.b32.xlu0 %v430, 8
      %v667 = vpop.permute.xlu0 %666
      %668 = vrot.lane.b32.xlu0 %v431, 8
      %v669 = vpop.permute.xlu0 %668
      %670 = vrot.lane.b32.xlu0 %v432, 8
      %v671 = vpop.permute.xlu0 %670
      %672 = vrot.lane.b32.xlu0 %v433, 8
      %v673 = vpop.permute.xlu0 %672
      %674 = vrot.lane.b32.xlu0 %v434, 8
      %v675 = vpop.permute.xlu0 %674
      %676 = vrot.lane.b32.xlu0 %v435, 8
      %v677 = vpop.permute.xlu0 %676
      %678 = vrot.lane.b32.xlu0 %v436, 8
      %v679 = vpop.permute.xlu0 %678
      %689 = vrot.lane.b32.xlu0 %v559, 10
      %v690 = vpop.permute.xlu0 %689
      %691 = vrot.lane.b32.xlu0 %v579, 10
      %v692 = vpop.permute.xlu0 %691
      %693 = vrot.lane.b32.xlu0 %v562, 10
      %v694 = vpop.permute.xlu0 %693
      %695 = vrot.lane.b32.xlu0 %v580, 10
      %v696 = vpop.permute.xlu0 %695
      %697 = vrot.lane.b32.xlu0 %v565, 10
      %v698 = vpop.permute.xlu0 %697
      %699 = vrot.lane.b32.xlu0 %v581, 10
      %v700 = vpop.permute.xlu0 %699
      %701 = vrot.lane.b32.xlu0 %v568, 10
      %v702 = vpop.permute.xlu0 %701
      %703 = vrot.lane.b32.xlu0 %v582, 10
      %v704 = vpop.permute.xlu0 %703
      %714 = vrot.lane.b32.xlu0 %v549, 12
      %v715 = vpop.permute.xlu0 %714
      %716 = vrot.lane.b32.xlu0 %v527, 12
      %v717 = vpop.permute.xlu0 %716
      %718 = vrot.lane.b32.xlu0 %v550, 12
      %v719 = vpop.permute.xlu0 %718
      %720 = vrot.lane.b32.xlu0 %v530, 12
      %v721 = vpop.permute.xlu0 %720
      %722 = vrot.lane.b32.xlu0 %v551, 12
      %v723 = vpop.permute.xlu0 %722
      %724 = vrot.lane.b32.xlu0 %v533, 12
      %v725 = vpop.permute.xlu0 %724
      %726 = vrot.lane.b32.xlu0 %v552, 12
      %v727 = vpop.permute.xlu0 %726
      %728 = vrot.lane.b32.xlu0 %v536, 12
      %v729 = vpop.permute.xlu0 %728
      %738 = vrot.lane.b32.xlu0 %v431, 14
      %v739 = vpop.permute.xlu0 %738
      %740 = vrot.lane.b32.xlu0 %v432, 14
      %v741 = vpop.permute.xlu0 %740
      %742 = vrot.lane.b32.xlu0 %v433, 14
      %v743 = vpop.permute.xlu0 %742
      %744 = vrot.lane.b32.xlu0 %v434, 14
      %v745 = vpop.permute.xlu0 %744
      %746 = vrot.lane.b32.xlu0 %v435, 14
      %v747 = vpop.permute.xlu0 %746
      %748 = vrot.lane.b32.xlu0 %v436, 14
      %v749 = vpop.permute.xlu0 %748
      %750 = vrot.lane.b32.xlu0 %v504, 14
      %v751 = vpop.permute.xlu0 %750
      %752 = vrot.lane.b32.xlu0 %v505, 14
      %v753 = vpop.permute.xlu0 %752
      %763 = vrot.lane.b32.xlu0 %v562, 16
      %v764 = vpop.permute.xlu0 %763
      %765 = vrot.lane.b32.xlu0 %v580, 16
      %v766 = vpop.permute.xlu0 %765
      %767 = vrot.lane.b32.xlu0 %v565, 16
      %v768 = vpop.permute.xlu0 %767
      %769 = vrot.lane.b32.xlu0 %v581, 16
      %v770 = vpop.permute.xlu0 %769
      %771 = vrot.lane.b32.xlu0 %v568, 16
      %v772 = vpop.permute.xlu0 %771
      %773 = vrot.lane.b32.xlu0 %v582, 16
      %v774 = vpop.permute.xlu0 %773
      %775 = vrot.lane.b32.xlu0 %v571, 16
      %v776 = vpop.permute.xlu0 %775
      %777 = vrot.lane.b32.xlu0 %v583, 16
      %v778 = vpop.permute.xlu0 %777
      %vm787 = vcmask 15360
      %v788 = vsel %vm787, %v547, %v585
      %v789 = vsel %vm787, %v521, %v587
      %v790 = vsel %vm787, %v548, %v589
      %v791 = vsel %vm787, %v524, %v591
      %v792 = vsel %vm787, %v549, %v593
      %v793 = vsel %vm787, %v527, %v595
      %v794 = vsel %vm787, %v550, %v597
      %v795 = vsel %vm787, %v530, %v599
      %v796 = vsel %vm343, %v788, %v613
      %v797 = vsel %vm343, %v789, %v615
      %v798 = vsel %vm343, %v790, %v617
      %v799 = vsel %vm343, %v791, %v619
      %v800 = vsel %vm343, %v792, %v621
      %v801 = vsel %vm343, %v793, %v623
      %v802 = vsel %vm343, %v794, %v625
      %v803 = vsel %vm343, %v795, %v627
      %vm804 = vcmask 48128
      %v805 = vsel %vm804, %v796, %v641
      %v806 = vsel %vm804, %v797, %v643
      %v807 = vsel %vm804, %v798, %v645
      %v808 = vsel %vm804, %v799, %v647
      %v809 = vsel %vm804, %v800, %v649
      %v810 = vsel %vm804, %v801, %v651
      %v811 = vsel %vm804, %v802, %v653
      %v812 = vsel %vm804, %v803, %v655
      %vm813 = vcmask 64512
      %v814 = vsel %vm813, %v805, %v665
      %v815 = vsel %vm813, %v806, %v667
      %v816 = vsel %vm813, %v807, %v669
      %v817 = vsel %vm813, %v808, %v671
      %v818 = vsel %vm813, %v809, %v673
      %v819 = vsel %vm813, %v810, %v675
      %v820 = vsel %vm813, %v811, %v677
      %v821 = vsel %vm813, %v812, %v679
      %vm822 = vcmask 80896
      %v823 = vsel %vm822, %v814, %v690
      %v824 = vsel %vm822, %v815, %v692
      %v825 = vsel %vm822, %v816, %v694
      %v826 = vsel %vm822, %v817, %v696
      %v827 = vsel %vm822, %v818, %v698
      %v828 = vsel %vm822, %v819, %v700
      %v829 = vsel %vm822, %v820, %v702
      %v830 = vsel %vm822, %v821, %v704
      %vm831 = vcmask 97280
      %v832 = vsel %vm831, %v823, %v715
      %v833 = vsel %vm831, %v824, %v717
      %v834 = vsel %vm831, %v825, %v719
      %v835 = vsel %vm831, %v826, %v721
      %v836 = vsel %vm831, %v827, %v723
      %v837 = vsel %vm831, %v828, %v725
      %v838 = vsel %vm831, %v829, %v727
      %v839 = vsel %vm831, %v830, %v729
      %vm840 = vcmask 113664
      %v841 = vsel %vm840, %v832, %v739
      %v842 = vsel %vm840, %v833, %v741
      %v843 = vsel %vm840, %v834, %v743
      %v844 = vsel %vm840, %v835, %v745
      %v845 = vsel %vm840, %v836, %v747
      %v846 = vsel %vm840, %v837, %v749
      %v847 = vsel %vm840, %v838, %v751
      %v848 = vsel %vm840, %v839, %v753
      %vm849 = vcmask 130048
      %v850 = vsel %vm849, %v841, %v764
      %v851 = vsel %vm849, %v842, %v766
      %v852 = vsel %vm849, %v843, %v768
      %v853 = vsel %vm849, %v844, %v770
      %v854 = vsel %vm849, %v845, %v772
      %v855 = vsel %vm849, %v846, %v774
      %v856 = vsel %vm849, %v847, %v776
      %v857 = vsel %vm849, %v848, %v778
      %v858 = vld [vmem:[%s4] sm:$0xff]
      %v859 = vld [vmem:[%s4 + $0x8] sm:$0xff]
      %v860 = vld [vmem:[%s4 + $0x10] sm:$0x3]
      %v861 = vld [vmem:[%s5] sm:$0x1]
      %v863 = vperm.slane %v861, 0
      %vm865 = vcmask 146432
      %v867 = vsel %vm865, %v850, 0
      %v870 = vsel %vm865, %v851, 0
      %v873 = vsel %vm865, %v852, 0
      %v876 = vsel %vm865, %v853, 0
      %v879 = vsel %vm865, %v854, 0
      %v882 = vsel %vm865, %v855, 0
      %v885 = vsel %vm865, %v856, 0
      %v888 = vsel %vm865, %v857, 0
      %vm890 = vcmask 1041408
      %v892 = vsel %vm890, %v860, 0
      %894 = vmatpush.msra.mxu0 0.0
      %895 = vmatpush.msra.mxu0 0.0
      %896 = vmatpush.msra.mxu0 0.0
      %897 = vmatpush.msra.mxu0 0.0
      %898 = vmatpush.msra.mxu0 0.0
      %899 = vmatpush.msra.mxu0 0.0
      %900 = vmatpush.msra.mxu0 0.0
      %901 = vmatpush.msra.mxu0 0.0
      %902 = vmatpush.msra.mxu0 0.0
      %903 = vmatpush.msra.mxu0 0.0
      %904 = vmatpush.msra.mxu0 0.0
      %905 = vmatpush.msra.mxu0 0.0
      %906 = vmatpush.msra.mxu0 0.0
      %907 = vmatpush.msra.mxu0 %v892
      %908 = vmatpush.msra.mxu0 %v859
      %909 = vmatpush.msra.mxu0 %v858
      %910 = vmatmul.f32.gmra.mxu0 %v867
      %v911 = vpop.f32.mrf.mxu0
      %v912 = vadd.f32 %v863, %v911
      %913 = vmatmul.f32.gmra.mxu0 %v870
      %v914 = vpop.f32.mrf.mxu0
      %v915 = vadd.f32 %v863, %v914
      %916 = vmatmul.f32.gmra.mxu0 %v873
      %v917 = vpop.f32.mrf.mxu0
      %v918 = vadd.f32 %v863, %v917
      %919 = vmatmul.f32.gmra.mxu0 %v876
      %v920 = vpop.f32.mrf.mxu0
      %v921 = vadd.f32 %v863, %v920
      %922 = vmatmul.f32.gmra.mxu0 %v879
      %v923 = vpop.f32.mrf.mxu0
      %v924 = vadd.f32 %v863, %v923
      %925 = vmatmul.f32.gmra.mxu0 %v882
      %v926 = vpop.f32.mrf.mxu0
      %v927 = vadd.f32 %v863, %v926
      %928 = vmatmul.f32.gmra.mxu0 %v885
      %v929 = vpop.f32.mrf.mxu0
      %v930 = vadd.f32 %v863, %v929
      %931 = vmatmul.f32.gmra.mxu0 %v888
      %v932 = vpop.f32.mrf.mxu0
      %v933 = vadd.f32 %v863, %v932
      %934 = vdwg.mxu0
      %vm935 = vcmp.gt.f32.partialorder %v912, 0.0
      %vm936 = vcmp.gt.f32.partialorder %v915, 0.0
      %vm937 = vcmp.gt.f32.partialorder %v918, 0.0
      %vm938 = vcmp.gt.f32.partialorder %v921, 0.0
      %vm939 = vcmp.gt.f32.partialorder %v924, 0.0
      %vm940 = vcmp.gt.f32.partialorder %v927, 0.0
      %vm941 = vcmp.gt.f32.partialorder %v930, 0.0
      %vm942 = vcmp.gt.f32.partialorder %v933, 0.0
      %v943 = vmul.f32 %v912, 0.1
      %v944 = vmul.f32 %v915, 0.1
      %v945 = vmul.f32 %v918, 0.1
      %v946 = vmul.f32 %v921, 0.1
      %v947 = vmul.f32 %v924, 0.1
      %v948 = vmul.f32 %v927, 0.1
      %v949 = vmul.f32 %v930, 0.1
      %v950 = vmul.f32 %v933, 0.1
      %v951 = vsel %vm935, %v912, %v943
      %v952 = vsel %vm936, %v915, %v944
      %v953 = vsel %vm937, %v918, %v945
      %v954 = vsel %vm938, %v921, %v946
      %v955 = vsel %vm939, %v924, %v947
      %v956 = vsel %vm940, %v927, %v948
      %v957 = vsel %vm941, %v930, %v949
      %v958 = vsel %vm942, %v933, %v950
      %v959 = vadd.f32 %v951, %v330
      %v960 = vadd.f32 %v952, %v331
      %v961 = vadd.f32 %v953, %v332
      %v962 = vadd.f32 %v954, %v333
      %v963 = vadd.f32 %v955, %v334
      %v964 = vadd.f32 %v956, %v335
      %v965 = vadd.f32 %v957, %v336
      %v966 = vadd.f32 %v958, %v337
      %967 = vst.msk [vmem:[%s328] sm:$0xff] %vm343, %v959
      %968 = vst.msk [vmem:[%s328 + $0x8] sm:$0xff] %vm343, %v960
      %969 = vst.msk [vmem:[%s328 + $0x10] sm:$0xff] %vm343, %v961
      %970 = vst.msk [vmem:[%s328 + $0x18] sm:$0xff] %vm343, %v962
      %971 = vst.msk [vmem:[%s328 + $0x20] sm:$0xff] %vm343, %v963
      %972 = vst.msk [vmem:[%s328 + $0x28] sm:$0xff] %vm343, %v964
      %973 = vst.msk [vmem:[%s328 + $0x30] sm:$0xff] %vm343, %v965
      %974 = vst.msk [vmem:[%s328 + $0x38] sm:$0xff] %vm343, %v966
      %s975 = smul.u32 4, %s22
      %p976 = scmp.lt.s32.totalorder %s21, 1
      %s977 = scalar_select %p976, %s21, 1
      %p978 = scmp.lt.s32.totalorder %s975, 15
      %s979 = scalar_select %p978, %s975, 15
      %s980 = smul.addr %s979, 2
      %s981 = smul.addr %s977, 32
      %s982 = sadd.s32 %s980, %s981
      %s983 = smul.addr %s982, 8
      %s984 = scalar_lea.vmem %s6, %s983
      // Predicated region
      $region45: #{tpu_custom_call.1} parent=43 // pred_check
        %p985 = pneg %p189
      $region46: #{tpu_custom_call.1} parent=43 // pred_check_branch
        %987 = sbr.rel (%p985) target = $region48
      $region47: #{tpu_custom_call.1} parent=43 // pred_region
        %s988 = smul.u32 4, %s22
      $region48: #{tpu_custom_call.1} parent=43 // pred_fallthru
        _
    $region44: #{tpu_custom_call.1} parent=5 // pred_fallthru
      _
    %p989 = scmp.le.s32.totalorder 2, %s12
    // Predicated region
    $region49: #{tpu_custom_call.1} parent=5 // pred_check
      %p990 = pneg %p989
    $region50: #{tpu_custom_call.1} parent=5 // pred_check_branch
      %992 = sbr.rel (%p990) target = $region52
    $region51: #{tpu_custom_call.1} parent=5 // pred_region
      %s993 = ssub.s32 %s12, 2
      // Predicated region
      $region53: #{tpu_custom_call.1} parent=51 // pred_check
        %p994 = pneg %p195
      $region54: #{tpu_custom_call.1} parent=51 // pred_check_branch
        %996 = sbr.rel (%p994) target = $region56
      $region55: #{tpu_custom_call.1} parent=51 // pred_region
        %s997 = smul.u32 4, %s24
        %p998 = scmp.lt.s32.totalorder %s23, 1
        %s999 = scalar_select %p998, %s23, 1
        %p1000 = scmp.lt.s32.totalorder %s997, 15
        %s1001 = scalar_select %p1000, %s997, 15
        %s1002 = smul.addr %s1001, 2
        %s1003 = smul.addr %s999, 32
        %s1004 = sadd.s32 %s1002, %s1003
        %s1005 = smul.addr %s1004, 8
        %s1006 = scalar_lea.vmem %s6, %s1005
      $region56: #{tpu_custom_call.1} parent=51 // pred_fallthru
        _
    $region52: #{tpu_custom_call.1} parent=5 // pred_fallthru
      _
  $region6: #{tpu_custom_call.1} parent=0 // loop_footer
    %s16 = sadd.s32 1, %s12
  $region7: #{tpu_custom_call.1} parent=0 // loop_footer_branch
    %11 = sbr.rel target = $region3
  $region8: #{tpu_custom_call.1} parent=0 // loop_exit
    _

</llo_original>
